<compile_context>
chip_gen: v7x
topology: tpu7x:2x2x1
jax: 0.10.0
libtpu: 0.0.40
codegen_flags: <defaults>
</compile_context>

<pallas_src>
import functools

import jax
import jax.numpy as jnp
from jax.experimental import pallas as pl
from jax.experimental.pallas import tpu as pltpu  # noqa: F401  (no TPU-specific params needed at these toy sizes)


# --------------------------------------------------------------------------
# Fused forward kernel: embedding gather + LSTM1 + LSTM2 + fc1, single invocation.
# --------------------------------------------------------------------------
def _fused_kernel(ids_ref, emb_ref,
                  wih1_ref, whh1_ref, b1_ref,
                  wih2_ref, whh2_ref, b2_ref,
                  wfc_ref, bfc_ref,
                  out_ref, *, T, B):
    # ids_ref : (T*B, 1) int32   time-major token ids
    # emb_ref : (V, E)           embedding table
    # wih1    : (E, 4H)  whh1: (H, 4H)   b1: (1, 4H)   -- gate order i,f,g,o (PyTorch)
    # wih2    : (H, 4H2) whh2: (H2, 4H2) b2: (1, 4H2)
    # wfc     : (H2, O)  bfc : (1, O)
    # out_ref : (B, O)
    V, _E = emb_ref.shape
    H = whh1_ref.shape[0]
    H2 = whh2_ref.shape[0]

    # ---- Embedding lookup fused with LSTM1 input projection ----
    #   g1x = one_hot @ (emb @ W_ih1)  (exact gather of rows of emb @ W_ih1)
    emb_proj = jnp.dot(emb_ref[...], wih1_ref[...],
                       preferred_element_type=jnp.float32)          # (V, 4H)
    ids = ids_ref[...]                                              # (T*B, 1) int32
    vocab = jax.lax.broadcasted_iota(jnp.int32, (T * B, V), 1)      # (T*B, V)
    one_hot = (vocab == ids).astype(jnp.float32)                    # (T*B, V)
    g1x = jnp.dot(one_hot, emb_proj,
                  preferred_element_type=jnp.float32) + b1_ref[...]  # (T*B, 4H)

    whh1 = whh1_ref[...]
    # LSTM2: fuse input & hidden projections into one matmul per step.
    w2_cat = jnp.concatenate([wih2_ref[...], whh2_ref[...]], axis=0)  # (H+H2, 4H2), done once
    b2 = b2_ref[...]

    def lstm_cell(gates, c_prev, hd):
        # PyTorch gate order: i, f, g, o  (static lane slices of the fused gate vector)
        i_g = jax.nn.sigmoid(gates[:, 0 * hd:1 * hd])
        f_g = jax.nn.sigmoid(gates[:, 1 * hd:2 * hd])
        g_g = jnp.tanh(gates[:, 2 * hd:3 * hd])
        o_g = jax.nn.sigmoid(gates[:, 3 * hd:4 * hd])
        c_new = f_g * c_prev + i_g * g_g
        h_new = o_g * jnp.tanh(c_new)
        return h_new, c_new

    # Zero initial states (matches torch.zeros h0/c0 for both LSTMs).
    h1 = jnp.zeros((B, H), jnp.float32)
    c1 = jnp.zeros((B, H), jnp.float32)
    h2 = jnp.zeros((B, H2), jnp.float32)
    c2 = jnp.zeros((B, H2), jnp.float32)

    # Fully unrolled recurrence: both cells advance each step (LSTM2 at t only needs h1 at t).
    for t in range(T):
        g1 = g1x[t * B:(t + 1) * B, :] + jnp.dot(
            h1, whh1, preferred_element_type=jnp.float32)
        h1, c1 = lstm_cell(g1, c1, H)
        g2 = jnp.dot(jnp.concatenate([h1, h2], axis=1), w2_cat,
                     preferred_element_type=jnp.float32) + b2
        h2, c2 = lstm_cell(g2, c2, H2)

    # ---- fc1 on the final hidden state only: the kernel's single HBM write ----
    out_ref[...] = jnp.dot(h2, wfc_ref[...],
                           preferred_element_type=jnp.float32) + bfc_ref[...]


# --------------------------------------------------------------------------
# Wrapper: one pallas_call for the whole forward pass.
# --------------------------------------------------------------------------
@jax.jit
def multi_class_forward(text, params):
    B, T = text.shape
    table = params["embedding"]
    V, E = table.shape
    H = params["w_hh1"].shape[0]
    H2 = params["w_hh2"].shape[0]
    O = params["w_fc"].shape[1]

    # Time-major, flattened token ids (tiny int32 transpose/reshape; all real work
    # — gather, projections, recurrence, fc — happens inside the fused kernel).
    ids_tm = jnp.transpose(text, (1, 0)).reshape(T * B, 1).astype(jnp.int32)

    def vspec(shape):
        return pl.BlockSpec(shape, lambda: (0,) * len(shape))

    kernel = functools.partial(_fused_kernel, T=T, B=B)
    return pl.pallas_call(
        kernel,
        out_shape=jax.ShapeDtypeStruct((B, O), jnp.float32),
        in_specs=[
            vspec((T * B, 1)),       # token ids (time-major)
            vspec((V, E)),           # embedding table
            vspec((E, 4 * H)),       # LSTM1 W_ih (pre-transposed)
            vspec((H, 4 * H)),       # LSTM1 W_hh
            vspec((1, 4 * H)),       # LSTM1 bias (b_ih + b_hh)
            vspec((H, 4 * H2)),      # LSTM2 W_ih
            vspec((H2, 4 * H2)),     # LSTM2 W_hh
            vspec((1, 4 * H2)),      # LSTM2 bias
            vspec((H2, O)),          # fc1 weight (pre-transposed)
            vspec((1, O)),           # fc1 bias
        ],
        out_specs=vspec((B, O)),
    )(ids_tm, table,
      params["w_ih1"], params["w_hh1"], params["b1"],
      params["w_ih2"], params["w_hh2"], params["b2"],
      params["w_fc"], params["b_fc"].reshape(1, O))


# --------------------------------------------------------------------------
# Parameter init (deterministic, PyTorch-like uniform init).
# --------------------------------------------------------------------------
def init_params(key, input_dim, embedding_dim, hidden_dim, output_dim):
    H, H2 = hidden_dim, hidden_dim // 2
    ks = jax.random.split(key, 11)

    def unif(k, shape, bound):
        return jax.random.uniform(k, shape, jnp.float32, -bound, bound)

    k1 = 1.0 / jnp.sqrt(H)
    k2 = 1.0 / jnp.sqrt(H2)
    return {
        # nn.Embedding(input_dim, embedding_dim)
        "embedding": jax.random.normal(ks[0], (input_dim, embedding_dim), jnp.float32),
        # nn.LSTM(embedding_dim, H): weights stored pre-transposed as (in, 4H)
        "w_ih1": unif(ks[1], (embedding_dim, 4 * H), k1),
        "w_hh1": unif(ks[2], (H, 4 * H), k1),
        "b1": unif(ks[3], (1, 4 * H), k1) + unif(ks[4], (1, 4 * H), k1),  # b_ih + b_hh
        # nn.LSTM(H, H//2)
        "w_ih2": unif(ks[5], (H, 4 * H2), k2),
        "w_hh2": unif(ks[6], (H2, 4 * H2), k2),
        "b2": unif(ks[7], (1, 4 * H2), k2) + unif(ks[8], (1, 4 * H2), k2),
        # nn.Linear(H//2, output_dim): stored as (H//2, O)
        "w_fc": unif(ks[9], (H2, output_dim), k2),
        "b_fc": unif(ks[10], (output_dim,), k2),
    }


# --------------------------------------------------------------------------
# Pure-JAX reference (no Pallas) for a correctness self-check.
# --------------------------------------------------------------------------
def reference_forward(text, params):
    emb = jnp.take(params["embedding"], text, axis=0)          # (B, T, E)
    H = params["w_hh1"].shape[0]
    H2 = params["w_hh2"].shape[0]

    def run_lstm(x_bte, wih, whh, b, hd):
        Bsz = x_bte.shape[0]

        def cell(carry, x_t):
            h, c = carry
            g = x_t @ wih + h @ whh + b
            i = jax.nn.sigmoid(g[:, 0 * hd:1 * hd])
            f = jax.nn.sigmoid(g[:, 1 * hd:2 * hd])
            gg = jnp.tanh(g[:, 2 * hd:3 * hd])
            o = jax.nn.sigmoid(g[:, 3 * hd:4 * hd])
            c = f * c + i * gg
            h = o * jnp.tanh(c)
            return (h, c), h

        init = (jnp.zeros((Bsz, hd), jnp.float32), jnp.zeros((Bsz, hd), jnp.float32))
        (h_last, _), ys = jax.lax.scan(cell, init, jnp.transpose(x_bte, (1, 0, 2)))
        return jnp.transpose(ys, (1, 0, 2)), h_last

    out1, _ = run_lstm(emb, params["w_ih1"], params["w_hh1"], params["b1"], H)
    _, h2 = run_lstm(out1, params["w_ih2"], params["w_hh2"], params["b2"], H2)
    return h2 @ params["w_fc"] + params["b_fc"]


if __name__ == "__main__":
    # Small deterministic config (n_layer = 1).
    VOCAB = 50      # input_dim
    EMB = 32        # embedding_dim
    HID = 32        # hidden_dim
    OUT = 5         # output_dim
    B, T = 2, 8

    key = jax.random.PRNGKey(0)
    pkey, tkey = jax.random.split(key)
    params = init_params(pkey, VOCAB, EMB, HID, OUT)
    text = jax.random.randint(tkey, (B, T), 0, VOCAB, dtype=jnp.int32)

    logits = multi_class_forward(text, params)
    jax.block_until_ready(logits)
    assert logits.shape == (B, OUT) and logits.dtype == jnp.float32

    ref = reference_forward(text, params)
    assert jnp.allclose(logits, ref, rtol=1e-3, atol=1e-3), (logits, ref)
    print("KERNEL_OK")
</pallas_src>

<mosaic_0001>
module attributes {stable_mosaic.version = 11 : i64} {
  func.func @_fused_kernel(%arg0: memref<16x1xi32, #tpu.memory_space<vmem>>, %arg1: memref<50x32xf32, #tpu.memory_space<vmem>>, %arg2: memref<32x128xf32, #tpu.memory_space<vmem>>, %arg3: memref<32x128xf32, #tpu.memory_space<vmem>>, %arg4: memref<1x128xf32, #tpu.memory_space<vmem>>, %arg5: memref<32x64xf32, #tpu.memory_space<vmem>>, %arg6: memref<16x64xf32, #tpu.memory_space<vmem>>, %arg7: memref<1x64xf32, #tpu.memory_space<vmem>>, %arg8: memref<16x5xf32, #tpu.memory_space<vmem>>, %arg9: memref<1x5xf32, #tpu.memory_space<vmem>>, %arg10: memref<2x5xf32, #tpu.memory_space<vmem>>) attributes {dimension_semantics = [], scalar_prefetch = 0 : i64, scratch_operands = 0 : i64, tpu.core_type = #tpu.core_type<tc>} {
    %c0 = arith.constant 0 : index
    %c0_0 = arith.constant 0 : index
    %0 = vector.load %arg1[%c0, %c0_0] : memref<50x32xf32, #tpu.memory_space<vmem>>, vector<50x32xf32>
    %c0_1 = arith.constant 0 : index
    %c0_2 = arith.constant 0 : index
    %1 = vector.load %arg2[%c0_1, %c0_2] : memref<32x128xf32, #tpu.memory_space<vmem>>, vector<32x128xf32>
    %cst = arith.constant dense<0.000000e+00> : vector<50x128xf32>
    %2 = tpu.matmul %0, %1, %cst {dimension_numbers = #tpu.dot_dimension_numbers<[1], [0], [0], [1], [0, 0, 1, 1], [], []>} : vector<50x32xf32>, vector<32x128xf32>, vector<50x128xf32> -> vector<50x128xf32>
    %c0_3 = arith.constant 0 : index
    %c0_4 = arith.constant 0 : index
    %3 = vector.load %arg0[%c0_3, %c0_4] : memref<16x1xi32, #tpu.memory_space<vmem>>, vector<16x1xi32>
    %4 = tpu.iota {dimensions = array<i32: 1>} : vector<16x50xi32>
    %5 = vector.broadcast %3 : vector<16x1xi32> to vector<16x50xi32>
    %6 = arith.cmpi eq, %4, %5 : vector<16x50xi32>
    %7 = arith.extui %6 : vector<16x50xi1> to vector<16x50xi32>
    %8 = arith.sitofp %7 : vector<16x50xi32> to vector<16x50xf32>
    %cst_5 = arith.constant dense<0.000000e+00> : vector<16x128xf32>
    %9 = tpu.matmul %8, %2, %cst_5 {dimension_numbers = #tpu.dot_dimension_numbers<[1], [0], [0], [1], [0, 0, 1, 1], [], []>} : vector<16x50xf32>, vector<50x128xf32>, vector<16x128xf32> -> vector<16x128xf32>
    %c0_6 = arith.constant 0 : index
    %c0_7 = arith.constant 0 : index
    %10 = vector.load %arg4[%c0_6, %c0_7] : memref<1x128xf32, #tpu.memory_space<vmem>>, vector<1x128xf32>
    %11 = vector.broadcast %10 : vector<1x128xf32> to vector<16x128xf32>
    %12 = arith.addf %9, %11 : vector<16x128xf32>
    %c0_8 = arith.constant 0 : index
    %c0_9 = arith.constant 0 : index
    %13 = vector.load %arg3[%c0_8, %c0_9] : memref<32x128xf32, #tpu.memory_space<vmem>>, vector<32x128xf32>
    %c0_10 = arith.constant 0 : index
    %c0_11 = arith.constant 0 : index
    %14 = vector.load %arg5[%c0_10, %c0_11] : memref<32x64xf32, #tpu.memory_space<vmem>>, vector<32x64xf32>
    %c0_12 = arith.constant 0 : index
    %c0_13 = arith.constant 0 : index
    %15 = vector.load %arg6[%c0_12, %c0_13] : memref<16x64xf32, #tpu.memory_space<vmem>>, vector<16x64xf32>
    %16 = tpu.concatenate %14, %15 in 0 : vector<32x64xf32>, vector<16x64xf32> -> vector<48x64xf32>
    %c0_14 = arith.constant 0 : index
    %c0_15 = arith.constant 0 : index
    %17 = vector.load %arg7[%c0_14, %c0_15] : memref<1x64xf32, #tpu.memory_space<vmem>>, vector<1x64xf32>
    %cst_16 = arith.constant 0.000000e+00 : f32
    %18 = vector.broadcast %cst_16 : f32 to vector<2x32xf32>
    %cst_17 = arith.constant 0.000000e+00 : f32
    %19 = vector.broadcast %cst_17 : f32 to vector<2x32xf32>
    %cst_18 = arith.constant 0.000000e+00 : f32
    %20 = vector.broadcast %cst_18 : f32 to vector<2x16xf32>
    %cst_19 = arith.constant 0.000000e+00 : f32
    %21 = vector.broadcast %cst_19 : f32 to vector<2x16xf32>
    %22 = vector.extract_strided_slice %12 {offsets = [0, 0], sizes = [2, 128], strides = [1, 1]} : vector<16x128xf32> to vector<2x128xf32>
    %cst_20 = arith.constant dense<0.000000e+00> : vector<2x128xf32>
    %23 = tpu.matmul %18, %13, %cst_20 {dimension_numbers = #tpu.dot_dimension_numbers<[1], [0], [0], [1], [0, 0, 1, 1], [], []>} : vector<2x32xf32>, vector<32x128xf32>, vector<2x128xf32> -> vector<2x128xf32>
    %24 = arith.addf %22, %23 : vector<2x128xf32>
    %25 = vector.extract_strided_slice %24 {offsets = [0, 0], sizes = [2, 32], strides = [1, 1]} : vector<2x128xf32> to vector<2x32xf32>
    %26 = arith.negf %25 : vector<2x32xf32>
    %27 = math.exp %26 : vector<2x32xf32>
    %cst_21 = arith.constant 1.000000e+00 : f32
    %28 = vector.broadcast %cst_21 : f32 to vector<2x32xf32>
    %29 = arith.addf %28, %27 : vector<2x32xf32>
    %30 = arith.divf %28, %29 : vector<2x32xf32>
    %31 = vector.extract_strided_slice %24 {offsets = [0, 32], sizes = [2, 32], strides = [1, 1]} : vector<2x128xf32> to vector<2x32xf32>
    %32 = arith.negf %31 : vector<2x32xf32>
    %33 = math.exp %32 : vector<2x32xf32>
    %cst_22 = arith.constant 1.000000e+00 : f32
    %34 = vector.broadcast %cst_22 : f32 to vector<2x32xf32>
    %35 = arith.addf %34, %33 : vector<2x32xf32>
    %36 = arith.divf %34, %35 : vector<2x32xf32>
    %37 = vector.extract_strided_slice %24 {offsets = [0, 64], sizes = [2, 32], strides = [1, 1]} : vector<2x128xf32> to vector<2x32xf32>
    %38 = math.tanh %37 : vector<2x32xf32>
    %39 = vector.extract_strided_slice %24 {offsets = [0, 96], sizes = [2, 32], strides = [1, 1]} : vector<2x128xf32> to vector<2x32xf32>
    %40 = arith.negf %39 : vector<2x32xf32>
    %41 = math.exp %40 : vector<2x32xf32>
    %cst_23 = arith.constant 1.000000e+00 : f32
    %42 = vector.broadcast %cst_23 : f32 to vector<2x32xf32>
    %43 = arith.addf %42, %41 : vector<2x32xf32>
    %44 = arith.divf %42, %43 : vector<2x32xf32>
    %45 = arith.mulf %36, %19 : vector<2x32xf32>
    %46 = arith.mulf %30, %38 : vector<2x32xf32>
    %47 = arith.addf %45, %46 : vector<2x32xf32>
    %48 = math.tanh %47 : vector<2x32xf32>
    %49 = arith.mulf %44, %48 : vector<2x32xf32>
    %50 = tpu.concatenate %49, %20 in 1 : vector<2x32xf32>, vector<2x16xf32> -> vector<2x48xf32>
    %cst_24 = arith.constant dense<0.000000e+00> : vector<2x64xf32>
    %51 = tpu.matmul %50, %16, %cst_24 {dimension_numbers = #tpu.dot_dimension_numbers<[1], [0], [0], [1], [0, 0, 1, 1], [], []>} : vector<2x48xf32>, vector<48x64xf32>, vector<2x64xf32> -> vector<2x64xf32>
    %52 = vector.broadcast %17 : vector<1x64xf32> to vector<2x64xf32>
    %53 = arith.addf %51, %52 : vector<2x64xf32>
    %54 = vector.extract_strided_slice %53 {offsets = [0, 0], sizes = [2, 16], strides = [1, 1]} : vector<2x64xf32> to vector<2x16xf32>
    %55 = arith.negf %54 : vector<2x16xf32>
    %56 = math.exp %55 : vector<2x16xf32>
    %cst_25 = arith.constant 1.000000e+00 : f32
    %57 = vector.broadcast %cst_25 : f32 to vector<2x16xf32>
    %58 = arith.addf %57, %56 : vector<2x16xf32>
    %59 = arith.divf %57, %58 : vector<2x16xf32>
    %60 = vector.extract_strided_slice %53 {offsets = [0, 16], sizes = [2, 16], strides = [1, 1]} : vector<2x64xf32> to vector<2x16xf32>
    %61 = arith.negf %60 : vector<2x16xf32>
    %62 = math.exp %61 : vector<2x16xf32>
    %cst_26 = arith.constant 1.000000e+00 : f32
    %63 = vector.broadcast %cst_26 : f32 to vector<2x16xf32>
    %64 = arith.addf %63, %62 : vector<2x16xf32>
    %65 = arith.divf %63, %64 : vector<2x16xf32>
    %66 = vector.extract_strided_slice %53 {offsets = [0, 32], sizes = [2, 16], strides = [1, 1]} : vector<2x64xf32> to vector<2x16xf32>
    %67 = math.tanh %66 : vector<2x16xf32>
    %68 = vector.extract_strided_slice %53 {offsets = [0, 48], sizes = [2, 16], strides = [1, 1]} : vector<2x64xf32> to vector<2x16xf32>
    %69 = arith.negf %68 : vector<2x16xf32>
    %70 = math.exp %69 : vector<2x16xf32>
    %cst_27 = arith.constant 1.000000e+00 : f32
    %71 = vector.broadcast %cst_27 : f32 to vector<2x16xf32>
    %72 = arith.addf %71, %70 : vector<2x16xf32>
    %73 = arith.divf %71, %72 : vector<2x16xf32>
    %74 = arith.mulf %65, %21 : vector<2x16xf32>
    %75 = arith.mulf %59, %67 : vector<2x16xf32>
    %76 = arith.addf %74, %75 : vector<2x16xf32>
    %77 = math.tanh %76 : vector<2x16xf32>
    %78 = arith.mulf %73, %77 : vector<2x16xf32>
    %79 = vector.extract_strided_slice %12 {offsets = [2, 0], sizes = [2, 128], strides = [1, 1]} : vector<16x128xf32> to vector<2x128xf32>
    %cst_28 = arith.constant dense<0.000000e+00> : vector<2x128xf32>
    %80 = tpu.matmul %49, %13, %cst_28 {dimension_numbers = #tpu.dot_dimension_numbers<[1], [0], [0], [1], [0, 0, 1, 1], [], []>} : vector<2x32xf32>, vector<32x128xf32>, vector<2x128xf32> -> vector<2x128xf32>
    %81 = arith.addf %79, %80 : vector<2x128xf32>
    %82 = vector.extract_strided_slice %81 {offsets = [0, 0], sizes = [2, 32], strides = [1, 1]} : vector<2x128xf32> to vector<2x32xf32>
    %83 = arith.negf %82 : vector<2x32xf32>
    %84 = math.exp %83 : vector<2x32xf32>
    %cst_29 = arith.constant 1.000000e+00 : f32
    %85 = vector.broadcast %cst_29 : f32 to vector<2x32xf32>
    %86 = arith.addf %85, %84 : vector<2x32xf32>
    %87 = arith.divf %85, %86 : vector<2x32xf32>
    %88 = vector.extract_strided_slice %81 {offsets = [0, 32], sizes = [2, 32], strides = [1, 1]} : vector<2x128xf32> to vector<2x32xf32>
    %89 = arith.negf %88 : vector<2x32xf32>
    %90 = math.exp %89 : vector<2x32xf32>
    %cst_30 = arith.constant 1.000000e+00 : f32
    %91 = vector.broadcast %cst_30 : f32 to vector<2x32xf32>
    %92 = arith.addf %91, %90 : vector<2x32xf32>
    %93 = arith.divf %91, %92 : vector<2x32xf32>
    %94 = vector.extract_strided_slice %81 {offsets = [0, 64], sizes = [2, 32], strides = [1, 1]} : vector<2x128xf32> to vector<2x32xf32>
    %95 = math.tanh %94 : vector<2x32xf32>
    %96 = vector.extract_strided_slice %81 {offsets = [0, 96], sizes = [2, 32], strides = [1, 1]} : vector<2x128xf32> to vector<2x32xf32>
    %97 = arith.negf %96 : vector<2x32xf32>
    %98 = math.exp %97 : vector<2x32xf32>
    %cst_31 = arith.constant 1.000000e+00 : f32
    %99 = vector.broadcast %cst_31 : f32 to vector<2x32xf32>
    %100 = arith.addf %99, %98 : vector<2x32xf32>
    %101 = arith.divf %99, %100 : vector<2x32xf32>
    %102 = arith.mulf %93, %47 : vector<2x32xf32>
    %103 = arith.mulf %87, %95 : vector<2x32xf32>
    %104 = arith.addf %102, %103 : vector<2x32xf32>
    %105 = math.tanh %104 : vector<2x32xf32>
    %106 = arith.mulf %101, %105 : vector<2x32xf32>
    %107 = tpu.concatenate %106, %78 in 1 : vector<2x32xf32>, vector<2x16xf32> -> vector<2x48xf32>
    %cst_32 = arith.constant dense<0.000000e+00> : vector<2x64xf32>
    %108 = tpu.matmul %107, %16, %cst_32 {dimension_numbers = #tpu.dot_dimension_numbers<[1], [0], [0], [1], [0, 0, 1, 1], [], []>} : vector<2x48xf32>, vector<48x64xf32>, vector<2x64xf32> -> vector<2x64xf32>
    %109 = vector.broadcast %17 : vector<1x64xf32> to vector<2x64xf32>
    %110 = arith.addf %108, %109 : vector<2x64xf32>
    %111 = vector.extract_strided_slice %110 {offsets = [0, 0], sizes = [2, 16], strides = [1, 1]} : vector<2x64xf32> to vector<2x16xf32>
    %112 = arith.negf %111 : vector<2x16xf32>
    %113 = math.exp %112 : vector<2x16xf32>
    %cst_33 = arith.constant 1.000000e+00 : f32
    %114 = vector.broadcast %cst_33 : f32 to vector<2x16xf32>
    %115 = arith.addf %114, %113 : vector<2x16xf32>
    %116 = arith.divf %114, %115 : vector<2x16xf32>
    %117 = vector.extract_strided_slice %110 {offsets = [0, 16], sizes = [2, 16], strides = [1, 1]} : vector<2x64xf32> to vector<2x16xf32>
    %118 = arith.negf %117 : vector<2x16xf32>
    %119 = math.exp %118 : vector<2x16xf32>
    %cst_34 = arith.constant 1.000000e+00 : f32
    %120 = vector.broadcast %cst_34 : f32 to vector<2x16xf32>
    %121 = arith.addf %120, %119 : vector<2x16xf32>
    %122 = arith.divf %120, %121 : vector<2x16xf32>
    %123 = vector.extract_strided_slice %110 {offsets = [0, 32], sizes = [2, 16], strides = [1, 1]} : vector<2x64xf32> to vector<2x16xf32>
    %124 = math.tanh %123 : vector<2x16xf32>
    %125 = vector.extract_strided_slice %110 {offsets = [0, 48], sizes = [2, 16], strides = [1, 1]} : vector<2x64xf32> to vector<2x16xf32>
    %126 = arith.negf %125 : vector<2x16xf32>
    %127 = math.exp %126 : vector<2x16xf32>
    %cst_35 = arith.constant 1.000000e+00 : f32
    %128 = vector.broadcast %cst_35 : f32 to vector<2x16xf32>
    %129 = arith.addf %128, %127 : vector<2x16xf32>
    %130 = arith.divf %128, %129 : vector<2x16xf32>
    %131 = arith.mulf %122, %76 : vector<2x16xf32>
    %132 = arith.mulf %116, %124 : vector<2x16xf32>
    %133 = arith.addf %131, %132 : vector<2x16xf32>
    %134 = math.tanh %133 : vector<2x16xf32>
    %135 = arith.mulf %130, %134 : vector<2x16xf32>
    %136 = vector.extract_strided_slice %12 {offsets = [4, 0], sizes = [2, 128], strides = [1, 1]} : vector<16x128xf32> to vector<2x128xf32>
    %cst_36 = arith.constant dense<0.000000e+00> : vector<2x128xf32>
    %137 = tpu.matmul %106, %13, %cst_36 {dimension_numbers = #tpu.dot_dimension_numbers<[1], [0], [0], [1], [0, 0, 1, 1], [], []>} : vector<2x32xf32>, vector<32x128xf32>, vector<2x128xf32> -> vector<2x128xf32>
    %138 = arith.addf %136, %137 : vector<2x128xf32>
    %139 = vector.extract_strided_slice %138 {offsets = [0, 0], sizes = [2, 32], strides = [1, 1]} : vector<2x128xf32> to vector<2x32xf32>
    %140 = arith.negf %139 : vector<2x32xf32>
    %141 = math.exp %140 : vector<2x32xf32>
    %cst_37 = arith.constant 1.000000e+00 : f32
    %142 = vector.broadcast %cst_37 : f32 to vector<2x32xf32>
    %143 = arith.addf %142, %141 : vector<2x32xf32>
    %144 = arith.divf %142, %143 : vector<2x32xf32>
    %145 = vector.extract_strided_slice %138 {offsets = [0, 32], sizes = [2, 32], strides = [1, 1]} : vector<2x128xf32> to vector<2x32xf32>
    %146 = arith.negf %145 : vector<2x32xf32>
    %147 = math.exp %146 : vector<2x32xf32>
    %cst_38 = arith.constant 1.000000e+00 : f32
    %148 = vector.broadcast %cst_38 : f32 to vector<2x32xf32>
    %149 = arith.addf %148, %147 : vector<2x32xf32>
    %150 = arith.divf %148, %149 : vector<2x32xf32>
    %151 = vector.extract_strided_slice %138 {offsets = [0, 64], sizes = [2, 32], strides = [1, 1]} : vector<2x128xf32> to vector<2x32xf32>
    %152 = math.tanh %151 : vector<2x32xf32>
    %153 = vector.extract_strided_slice %138 {offsets = [0, 96], sizes = [2, 32], strides = [1, 1]} : vector<2x128xf32> to vector<2x32xf32>
    %154 = arith.negf %153 : vector<2x32xf32>
    %155 = math.exp %154 : vector<2x32xf32>
    %cst_39 = arith.constant 1.000000e+00 : f32
    %156 = vector.broadcast %cst_39 : f32 to vector<2x32xf32>
    %157 = arith.addf %156, %155 : vector<2x32xf32>
    %158 = arith.divf %156, %157 : vector<2x32xf32>
    %159 = arith.mulf %150, %104 : vector<2x32xf32>
    %160 = arith.mulf %144, %152 : vector<2x32xf32>
    %161 = arith.addf %159, %160 : vector<2x32xf32>
    %162 = math.tanh %161 : vector<2x32xf32>
    %163 = arith.mulf %158, %162 : vector<2x32xf32>
    %164 = tpu.concatenate %163, %135 in 1 : vector<2x32xf32>, vector<2x16xf32> -> vector<2x48xf32>
    %cst_40 = arith.constant dense<0.000000e+00> : vector<2x64xf32>
    %165 = tpu.matmul %164, %16, %cst_40 {dimension_numbers = #tpu.dot_dimension_numbers<[1], [0], [0], [1], [0, 0, 1, 1], [], []>} : vector<2x48xf32>, vector<48x64xf32>, vector<2x64xf32> -> vector<2x64xf32>
    %166 = vector.broadcast %17 : vector<1x64xf32> to vector<2x64xf32>
    %167 = arith.addf %165, %166 : vector<2x64xf32>
    %168 = vector.extract_strided_slice %167 {offsets = [0, 0], sizes = [2, 16], strides = [1, 1]} : vector<2x64xf32> to vector<2x16xf32>
    %169 = arith.negf %168 : vector<2x16xf32>
    %170 = math.exp %169 : vector<2x16xf32>
    %cst_41 = arith.constant 1.000000e+00 : f32
    %171 = vector.broadcast %cst_41 : f32 to vector<2x16xf32>
    %172 = arith.addf %171, %170 : vector<2x16xf32>
    %173 = arith.divf %171, %172 : vector<2x16xf32>
    %174 = vector.extract_strided_slice %167 {offsets = [0, 16], sizes = [2, 16], strides = [1, 1]} : vector<2x64xf32> to vector<2x16xf32>
    %175 = arith.negf %174 : vector<2x16xf32>
    %176 = math.exp %175 : vector<2x16xf32>
    %cst_42 = arith.constant 1.000000e+00 : f32
    %177 = vector.broadcast %cst_42 : f32 to vector<2x16xf32>
    %178 = arith.addf %177, %176 : vector<2x16xf32>
    %179 = arith.divf %177, %178 : vector<2x16xf32>
    %180 = vector.extract_strided_slice %167 {offsets = [0, 32], sizes = [2, 16], strides = [1, 1]} : vector<2x64xf32> to vector<2x16xf32>
    %181 = math.tanh %180 : vector<2x16xf32>
    %182 = vector.extract_strided_slice %167 {offsets = [0, 48], sizes = [2, 16], strides = [1, 1]} : vector<2x64xf32> to vector<2x16xf32>
    %183 = arith.negf %182 : vector<2x16xf32>
    %184 = math.exp %183 : vector<2x16xf32>
    %cst_43 = arith.constant 1.000000e+00 : f32
    %185 = vector.broadcast %cst_43 : f32 to vector<2x16xf32>
    %186 = arith.addf %185, %184 : vector<2x16xf32>
    %187 = arith.divf %185, %186 : vector<2x16xf32>
    %188 = arith.mulf %179, %133 : vector<2x16xf32>
    %189 = arith.mulf %173, %181 : vector<2x16xf32>
    %190 = arith.addf %188, %189 : vector<2x16xf32>
    %191 = math.tanh %190 : vector<2x16xf32>
    %192 = arith.mulf %187, %191 : vector<2x16xf32>
    %193 = vector.extract_strided_slice %12 {offsets = [6, 0], sizes = [2, 128], strides = [1, 1]} : vector<16x128xf32> to vector<2x128xf32>
    %cst_44 = arith.constant dense<0.000000e+00> : vector<2x128xf32>
    %194 = tpu.matmul %163, %13, %cst_44 {dimension_numbers = #tpu.dot_dimension_numbers<[1], [0], [0], [1], [0, 0, 1, 1], [], []>} : vector<2x32xf32>, vector<32x128xf32>, vector<2x128xf32> -> vector<2x128xf32>
    %195 = arith.addf %193, %194 : vector<2x128xf32>
    %196 = vector.extract_strided_slice %195 {offsets = [0, 0], sizes = [2, 32], strides = [1, 1]} : vector<2x128xf32> to vector<2x32xf32>
    %197 = arith.negf %196 : vector<2x32xf32>
    %198 = math.exp %197 : vector<2x32xf32>
    %cst_45 = arith.constant 1.000000e+00 : f32
    %199 = vector.broadcast %cst_45 : f32 to vector<2x32xf32>
    %200 = arith.addf %199, %198 : vector<2x32xf32>
    %201 = arith.divf %199, %200 : vector<2x32xf32>
    %202 = vector.extract_strided_slice %195 {offsets = [0, 32], sizes = [2, 32], strides = [1, 1]} : vector<2x128xf32> to vector<2x32xf32>
    %203 = arith.negf %202 : vector<2x32xf32>
    %204 = math.exp %203 : vector<2x32xf32>
    %cst_46 = arith.constant 1.000000e+00 : f32
    %205 = vector.broadcast %cst_46 : f32 to vector<2x32xf32>
    %206 = arith.addf %205, %204 : vector<2x32xf32>
    %207 = arith.divf %205, %206 : vector<2x32xf32>
    %208 = vector.extract_strided_slice %195 {offsets = [0, 64], sizes = [2, 32], strides = [1, 1]} : vector<2x128xf32> to vector<2x32xf32>
    %209 = math.tanh %208 : vector<2x32xf32>
    %210 = vector.extract_strided_slice %195 {offsets = [0, 96], sizes = [2, 32], strides = [1, 1]} : vector<2x128xf32> to vector<2x32xf32>
    %211 = arith.negf %210 : vector<2x32xf32>
    %212 = math.exp %211 : vector<2x32xf32>
    %cst_47 = arith.constant 1.000000e+00 : f32
    %213 = vector.broadcast %cst_47 : f32 to vector<2x32xf32>
    %214 = arith.addf %213, %212 : vector<2x32xf32>
    %215 = arith.divf %213, %214 : vector<2x32xf32>
    %216 = arith.mulf %207, %161 : vector<2x32xf32>
    %217 = arith.mulf %201, %209 : vector<2x32xf32>
    %218 = arith.addf %216, %217 : vector<2x32xf32>
    %219 = math.tanh %218 : vector<2x32xf32>
    %220 = arith.mulf %215, %219 : vector<2x32xf32>
    %221 = tpu.concatenate %220, %192 in 1 : vector<2x32xf32>, vector<2x16xf32> -> vector<2x48xf32>
    %cst_48 = arith.constant dense<0.000000e+00> : vector<2x64xf32>
    %222 = tpu.matmul %221, %16, %cst_48 {dimension_numbers = #tpu.dot_dimension_numbers<[1], [0], [0], [1], [0, 0, 1, 1], [], []>} : vector<2x48xf32>, vector<48x64xf32>, vector<2x64xf32> -> vector<2x64xf32>
    %223 = vector.broadcast %17 : vector<1x64xf32> to vector<2x64xf32>
    %224 = arith.addf %222, %223 : vector<2x64xf32>
    %225 = vector.extract_strided_slice %224 {offsets = [0, 0], sizes = [2, 16], strides = [1, 1]} : vector<2x64xf32> to vector<2x16xf32>
    %226 = arith.negf %225 : vector<2x16xf32>
    %227 = math.exp %226 : vector<2x16xf32>
    %cst_49 = arith.constant 1.000000e+00 : f32
    %228 = vector.broadcast %cst_49 : f32 to vector<2x16xf32>
    %229 = arith.addf %228, %227 : vector<2x16xf32>
    %230 = arith.divf %228, %229 : vector<2x16xf32>
    %231 = vector.extract_strided_slice %224 {offsets = [0, 16], sizes = [2, 16], strides = [1, 1]} : vector<2x64xf32> to vector<2x16xf32>
    %232 = arith.negf %231 : vector<2x16xf32>
    %233 = math.exp %232 : vector<2x16xf32>
    %cst_50 = arith.constant 1.000000e+00 : f32
    %234 = vector.broadcast %cst_50 : f32 to vector<2x16xf32>
    %235 = arith.addf %234, %233 : vector<2x16xf32>
    %236 = arith.divf %234, %235 : vector<2x16xf32>
    %237 = vector.extract_strided_slice %224 {offsets = [0, 32], sizes = [2, 16], strides = [1, 1]} : vector<2x64xf32> to vector<2x16xf32>
    %238 = math.tanh %237 : vector<2x16xf32>
    %239 = vector.extract_strided_slice %224 {offsets = [0, 48], sizes = [2, 16], strides = [1, 1]} : vector<2x64xf32> to vector<2x16xf32>
    %240 = arith.negf %239 : vector<2x16xf32>
    %241 = math.exp %240 : vector<2x16xf32>
    %cst_51 = arith.constant 1.000000e+00 : f32
    %242 = vector.broadcast %cst_51 : f32 to vector<2x16xf32>
    %243 = arith.addf %242, %241 : vector<2x16xf32>
    %244 = arith.divf %242, %243 : vector<2x16xf32>
    %245 = arith.mulf %236, %190 : vector<2x16xf32>
    %246 = arith.mulf %230, %238 : vector<2x16xf32>
    %247 = arith.addf %245, %246 : vector<2x16xf32>
    %248 = math.tanh %247 : vector<2x16xf32>
    %249 = arith.mulf %244, %248 : vector<2x16xf32>
    %250 = vector.extract_strided_slice %12 {offsets = [8, 0], sizes = [2, 128], strides = [1, 1]} : vector<16x128xf32> to vector<2x128xf32>
    %cst_52 = arith.constant dense<0.000000e+00> : vector<2x128xf32>
    %251 = tpu.matmul %220, %13, %cst_52 {dimension_numbers = #tpu.dot_dimension_numbers<[1], [0], [0], [1], [0, 0, 1, 1], [], []>} : vector<2x32xf32>, vector<32x128xf32>, vector<2x128xf32> -> vector<2x128xf32>
    %252 = arith.addf %250, %251 : vector<2x128xf32>
    %253 = vector.extract_strided_slice %252 {offsets = [0, 0], sizes = [2, 32], strides = [1, 1]} : vector<2x128xf32> to vector<2x32xf32>
    %254 = arith.negf %253 : vector<2x32xf32>
    %255 = math.exp %254 : vector<2x32xf32>
    %cst_53 = arith.constant 1.000000e+00 : f32
    %256 = vector.broadcast %cst_53 : f32 to vector<2x32xf32>
    %257 = arith.addf %256, %255 : vector<2x32xf32>
    %258 = arith.divf %256, %257 : vector<2x32xf32>
    %259 = vector.extract_strided_slice %252 {offsets = [0, 32], sizes = [2, 32], strides = [1, 1]} : vector<2x128xf32> to vector<2x32xf32>
    %260 = arith.negf %259 : vector<2x32xf32>
    %261 = math.exp %260 : vector<2x32xf32>
    %cst_54 = arith.constant 1.000000e+00 : f32
    %262 = vector.broadcast %cst_54 : f32 to vector<2x32xf32>
    %263 = arith.addf %262, %261 : vector<2x32xf32>
    %264 = arith.divf %262, %263 : vector<2x32xf32>
    %265 = vector.extract_strided_slice %252 {offsets = [0, 64], sizes = [2, 32], strides = [1, 1]} : vector<2x128xf32> to vector<2x32xf32>
    %266 = math.tanh %265 : vector<2x32xf32>
    %267 = vector.extract_strided_slice %252 {offsets = [0, 96], sizes = [2, 32], strides = [1, 1]} : vector<2x128xf32> to vector<2x32xf32>
    %268 = arith.negf %267 : vector<2x32xf32>
    %269 = math.exp %268 : vector<2x32xf32>
    %cst_55 = arith.constant 1.000000e+00 : f32
    %270 = vector.broadcast %cst_55 : f32 to vector<2x32xf32>
    %271 = arith.addf %270, %269 : vector<2x32xf32>
    %272 = arith.divf %270, %271 : vector<2x32xf32>
    %273 = arith.mulf %264, %218 : vector<2x32xf32>
    %274 = arith.mulf %258, %266 : vector<2x32xf32>
    %275 = arith.addf %273, %274 : vector<2x32xf32>
    %276 = math.tanh %275 : vector<2x32xf32>
    %277 = arith.mulf %272, %276 : vector<2x32xf32>
    %278 = tpu.concatenate %277, %249 in 1 : vector<2x32xf32>, vector<2x16xf32> -> vector<2x48xf32>
    %cst_56 = arith.constant dense<0.000000e+00> : vector<2x64xf32>
    %279 = tpu.matmul %278, %16, %cst_56 {dimension_numbers = #tpu.dot_dimension_numbers<[1], [0], [0], [1], [0, 0, 1, 1], [], []>} : vector<2x48xf32>, vector<48x64xf32>, vector<2x64xf32> -> vector<2x64xf32>
    %280 = vector.broadcast %17 : vector<1x64xf32> to vector<2x64xf32>
    %281 = arith.addf %279, %280 : vector<2x64xf32>
    %282 = vector.extract_strided_slice %281 {offsets = [0, 0], sizes = [2, 16], strides = [1, 1]} : vector<2x64xf32> to vector<2x16xf32>
    %283 = arith.negf %282 : vector<2x16xf32>
    %284 = math.exp %283 : vector<2x16xf32>
    %cst_57 = arith.constant 1.000000e+00 : f32
    %285 = vector.broadcast %cst_57 : f32 to vector<2x16xf32>
    %286 = arith.addf %285, %284 : vector<2x16xf32>
    %287 = arith.divf %285, %286 : vector<2x16xf32>
    %288 = vector.extract_strided_slice %281 {offsets = [0, 16], sizes = [2, 16], strides = [1, 1]} : vector<2x64xf32> to vector<2x16xf32>
    %289 = arith.negf %288 : vector<2x16xf32>
    %290 = math.exp %289 : vector<2x16xf32>
    %cst_58 = arith.constant 1.000000e+00 : f32
    %291 = vector.broadcast %cst_58 : f32 to vector<2x16xf32>
    %292 = arith.addf %291, %290 : vector<2x16xf32>
    %293 = arith.divf %291, %292 : vector<2x16xf32>
    %294 = vector.extract_strided_slice %281 {offsets = [0, 32], sizes = [2, 16], strides = [1, 1]} : vector<2x64xf32> to vector<2x16xf32>
    %295 = math.tanh %294 : vector<2x16xf32>
    %296 = vector.extract_strided_slice %281 {offsets = [0, 48], sizes = [2, 16], strides = [1, 1]} : vector<2x64xf32> to vector<2x16xf32>
    %297 = arith.negf %296 : vector<2x16xf32>
    %298 = math.exp %297 : vector<2x16xf32>
    %cst_59 = arith.constant 1.000000e+00 : f32
    %299 = vector.broadcast %cst_59 : f32 to vector<2x16xf32>
    %300 = arith.addf %299, %298 : vector<2x16xf32>
    %301 = arith.divf %299, %300 : vector<2x16xf32>
    %302 = arith.mulf %293, %247 : vector<2x16xf32>
    %303 = arith.mulf %287, %295 : vector<2x16xf32>
    %304 = arith.addf %302, %303 : vector<2x16xf32>
    %305 = math.tanh %304 : vector<2x16xf32>
    %306 = arith.mulf %301, %305 : vector<2x16xf32>
    %307 = vector.extract_strided_slice %12 {offsets = [10, 0], sizes = [2, 128], strides = [1, 1]} : vector<16x128xf32> to vector<2x128xf32>
    %cst_60 = arith.constant dense<0.000000e+00> : vector<2x128xf32>
    %308 = tpu.matmul %277, %13, %cst_60 {dimension_numbers = #tpu.dot_dimension_numbers<[1], [0], [0], [1], [0, 0, 1, 1], [], []>} : vector<2x32xf32>, vector<32x128xf32>, vector<2x128xf32> -> vector<2x128xf32>
    %309 = arith.addf %307, %308 : vector<2x128xf32>
    %310 = vector.extract_strided_slice %309 {offsets = [0, 0], sizes = [2, 32], strides = [1, 1]} : vector<2x128xf32> to vector<2x32xf32>
    %311 = arith.negf %310 : vector<2x32xf32>
    %312 = math.exp %311 : vector<2x32xf32>
    %cst_61 = arith.constant 1.000000e+00 : f32
    %313 = vector.broadcast %cst_61 : f32 to vector<2x32xf32>
    %314 = arith.addf %313, %312 : vector<2x32xf32>
    %315 = arith.divf %313, %314 : vector<2x32xf32>
    %316 = vector.extract_strided_slice %309 {offsets = [0, 32], sizes = [2, 32], strides = [1, 1]} : vector<2x128xf32> to vector<2x32xf32>
    %317 = arith.negf %316 : vector<2x32xf32>
    %318 = math.exp %317 : vector<2x32xf32>
    %cst_62 = arith.constant 1.000000e+00 : f32
    %319 = vector.broadcast %cst_62 : f32 to vector<2x32xf32>
    %320 = arith.addf %319, %318 : vector<2x32xf32>
    %321 = arith.divf %319, %320 : vector<2x32xf32>
    %322 = vector.extract_strided_slice %309 {offsets = [0, 64], sizes = [2, 32], strides = [1, 1]} : vector<2x128xf32> to vector<2x32xf32>
    %323 = math.tanh %322 : vector<2x32xf32>
    %324 = vector.extract_strided_slice %309 {offsets = [0, 96], sizes = [2, 32], strides = [1, 1]} : vector<2x128xf32> to vector<2x32xf32>
    %325 = arith.negf %324 : vector<2x32xf32>
    %326 = math.exp %325 : vector<2x32xf32>
    %cst_63 = arith.constant 1.000000e+00 : f32
    %327 = vector.broadcast %cst_63 : f32 to vector<2x32xf32>
    %328 = arith.addf %327, %326 : vector<2x32xf32>
    %329 = arith.divf %327, %328 : vector<2x32xf32>
    %330 = arith.mulf %321, %275 : vector<2x32xf32>
    %331 = arith.mulf %315, %323 : vector<2x32xf32>
    %332 = arith.addf %330, %331 : vector<2x32xf32>
    %333 = math.tanh %332 : vector<2x32xf32>
    %334 = arith.mulf %329, %333 : vector<2x32xf32>
    %335 = tpu.concatenate %334, %306 in 1 : vector<2x32xf32>, vector<2x16xf32> -> vector<2x48xf32>
    %cst_64 = arith.constant dense<0.000000e+00> : vector<2x64xf32>
    %336 = tpu.matmul %335, %16, %cst_64 {dimension_numbers = #tpu.dot_dimension_numbers<[1], [0], [0], [1], [0, 0, 1, 1], [], []>} : vector<2x48xf32>, vector<48x64xf32>, vector<2x64xf32> -> vector<2x64xf32>
    %337 = vector.broadcast %17 : vector<1x64xf32> to vector<2x64xf32>
    %338 = arith.addf %336, %337 : vector<2x64xf32>
    %339 = vector.extract_strided_slice %338 {offsets = [0, 0], sizes = [2, 16], strides = [1, 1]} : vector<2x64xf32> to vector<2x16xf32>
    %340 = arith.negf %339 : vector<2x16xf32>
    %341 = math.exp %340 : vector<2x16xf32>
    %cst_65 = arith.constant 1.000000e+00 : f32
    %342 = vector.broadcast %cst_65 : f32 to vector<2x16xf32>
    %343 = arith.addf %342, %341 : vector<2x16xf32>
    %344 = arith.divf %342, %343 : vector<2x16xf32>
    %345 = vector.extract_strided_slice %338 {offsets = [0, 16], sizes = [2, 16], strides = [1, 1]} : vector<2x64xf32> to vector<2x16xf32>
    %346 = arith.negf %345 : vector<2x16xf32>
    %347 = math.exp %346 : vector<2x16xf32>
    %cst_66 = arith.constant 1.000000e+00 : f32
    %348 = vector.broadcast %cst_66 : f32 to vector<2x16xf32>
    %349 = arith.addf %348, %347 : vector<2x16xf32>
    %350 = arith.divf %348, %349 : vector<2x16xf32>
    %351 = vector.extract_strided_slice %338 {offsets = [0, 32], sizes = [2, 16], strides = [1, 1]} : vector<2x64xf32> to vector<2x16xf32>
    %352 = math.tanh %351 : vector<2x16xf32>
    %353 = vector.extract_strided_slice %338 {offsets = [0, 48], sizes = [2, 16], strides = [1, 1]} : vector<2x64xf32> to vector<2x16xf32>
    %354 = arith.negf %353 : vector<2x16xf32>
    %355 = math.exp %354 : vector<2x16xf32>
    %cst_67 = arith.constant 1.000000e+00 : f32
    %356 = vector.broadcast %cst_67 : f32 to vector<2x16xf32>
    %357 = arith.addf %356, %355 : vector<2x16xf32>
    %358 = arith.divf %356, %357 : vector<2x16xf32>
    %359 = arith.mulf %350, %304 : vector<2x16xf32>
    %360 = arith.mulf %344, %352 : vector<2x16xf32>
    %361 = arith.addf %359, %360 : vector<2x16xf32>
    %362 = math.tanh %361 : vector<2x16xf32>
    %363 = arith.mulf %358, %362 : vector<2x16xf32>
    %364 = vector.extract_strided_slice %12 {offsets = [12, 0], sizes = [2, 128], strides = [1, 1]} : vector<16x128xf32> to vector<2x128xf32>
    %cst_68 = arith.constant dense<0.000000e+00> : vector<2x128xf32>
    %365 = tpu.matmul %334, %13, %cst_68 {dimension_numbers = #tpu.dot_dimension_numbers<[1], [0], [0], [1], [0, 0, 1, 1], [], []>} : vector<2x32xf32>, vector<32x128xf32>, vector<2x128xf32> -> vector<2x128xf32>
    %366 = arith.addf %364, %365 : vector<2x128xf32>
    %367 = vector.extract_strided_slice %366 {offsets = [0, 0], sizes = [2, 32], strides = [1, 1]} : vector<2x128xf32> to vector<2x32xf32>
    %368 = arith.negf %367 : vector<2x32xf32>
    %369 = math.exp %368 : vector<2x32xf32>
    %cst_69 = arith.constant 1.000000e+00 : f32
    %370 = vector.broadcast %cst_69 : f32 to vector<2x32xf32>
    %371 = arith.addf %370, %369 : vector<2x32xf32>
    %372 = arith.divf %370, %371 : vector<2x32xf32>
    %373 = vector.extract_strided_slice %366 {offsets = [0, 32], sizes = [2, 32], strides = [1, 1]} : vector<2x128xf32> to vector<2x32xf32>
    %374 = arith.negf %373 : vector<2x32xf32>
    %375 = math.exp %374 : vector<2x32xf32>
    %cst_70 = arith.constant 1.000000e+00 : f32
    %376 = vector.broadcast %cst_70 : f32 to vector<2x32xf32>
    %377 = arith.addf %376, %375 : vector<2x32xf32>
    %378 = arith.divf %376, %377 : vector<2x32xf32>
    %379 = vector.extract_strided_slice %366 {offsets = [0, 64], sizes = [2, 32], strides = [1, 1]} : vector<2x128xf32> to vector<2x32xf32>
    %380 = math.tanh %379 : vector<2x32xf32>
    %381 = vector.extract_strided_slice %366 {offsets = [0, 96], sizes = [2, 32], strides = [1, 1]} : vector<2x128xf32> to vector<2x32xf32>
    %382 = arith.negf %381 : vector<2x32xf32>
    %383 = math.exp %382 : vector<2x32xf32>
    %cst_71 = arith.constant 1.000000e+00 : f32
    %384 = vector.broadcast %cst_71 : f32 to vector<2x32xf32>
    %385 = arith.addf %384, %383 : vector<2x32xf32>
    %386 = arith.divf %384, %385 : vector<2x32xf32>
    %387 = arith.mulf %378, %332 : vector<2x32xf32>
    %388 = arith.mulf %372, %380 : vector<2x32xf32>
    %389 = arith.addf %387, %388 : vector<2x32xf32>
    %390 = math.tanh %389 : vector<2x32xf32>
    %391 = arith.mulf %386, %390 : vector<2x32xf32>
    %392 = tpu.concatenate %391, %363 in 1 : vector<2x32xf32>, vector<2x16xf32> -> vector<2x48xf32>
    %cst_72 = arith.constant dense<0.000000e+00> : vector<2x64xf32>
    %393 = tpu.matmul %392, %16, %cst_72 {dimension_numbers = #tpu.dot_dimension_numbers<[1], [0], [0], [1], [0, 0, 1, 1], [], []>} : vector<2x48xf32>, vector<48x64xf32>, vector<2x64xf32> -> vector<2x64xf32>
    %394 = vector.broadcast %17 : vector<1x64xf32> to vector<2x64xf32>
    %395 = arith.addf %393, %394 : vector<2x64xf32>
    %396 = vector.extract_strided_slice %395 {offsets = [0, 0], sizes = [2, 16], strides = [1, 1]} : vector<2x64xf32> to vector<2x16xf32>
    %397 = arith.negf %396 : vector<2x16xf32>
    %398 = math.exp %397 : vector<2x16xf32>
    %cst_73 = arith.constant 1.000000e+00 : f32
    %399 = vector.broadcast %cst_73 : f32 to vector<2x16xf32>
    %400 = arith.addf %399, %398 : vector<2x16xf32>
    %401 = arith.divf %399, %400 : vector<2x16xf32>
    %402 = vector.extract_strided_slice %395 {offsets = [0, 16], sizes = [2, 16], strides = [1, 1]} : vector<2x64xf32> to vector<2x16xf32>
    %403 = arith.negf %402 : vector<2x16xf32>
    %404 = math.exp %403 : vector<2x16xf32>
    %cst_74 = arith.constant 1.000000e+00 : f32
    %405 = vector.broadcast %cst_74 : f32 to vector<2x16xf32>
    %406 = arith.addf %405, %404 : vector<2x16xf32>
    %407 = arith.divf %405, %406 : vector<2x16xf32>
    %408 = vector.extract_strided_slice %395 {offsets = [0, 32], sizes = [2, 16], strides = [1, 1]} : vector<2x64xf32> to vector<2x16xf32>
    %409 = math.tanh %408 : vector<2x16xf32>
    %410 = vector.extract_strided_slice %395 {offsets = [0, 48], sizes = [2, 16], strides = [1, 1]} : vector<2x64xf32> to vector<2x16xf32>
    %411 = arith.negf %410 : vector<2x16xf32>
    %412 = math.exp %411 : vector<2x16xf32>
    %cst_75 = arith.constant 1.000000e+00 : f32
    %413 = vector.broadcast %cst_75 : f32 to vector<2x16xf32>
    %414 = arith.addf %413, %412 : vector<2x16xf32>
    %415 = arith.divf %413, %414 : vector<2x16xf32>
    %416 = arith.mulf %407, %361 : vector<2x16xf32>
    %417 = arith.mulf %401, %409 : vector<2x16xf32>
    %418 = arith.addf %416, %417 : vector<2x16xf32>
    %419 = math.tanh %418 : vector<2x16xf32>
    %420 = arith.mulf %415, %419 : vector<2x16xf32>
    %421 = vector.extract_strided_slice %12 {offsets = [14, 0], sizes = [2, 128], strides = [1, 1]} : vector<16x128xf32> to vector<2x128xf32>
    %cst_76 = arith.constant dense<0.000000e+00> : vector<2x128xf32>
    %422 = tpu.matmul %391, %13, %cst_76 {dimension_numbers = #tpu.dot_dimension_numbers<[1], [0], [0], [1], [0, 0, 1, 1], [], []>} : vector<2x32xf32>, vector<32x128xf32>, vector<2x128xf32> -> vector<2x128xf32>
    %423 = arith.addf %421, %422 : vector<2x128xf32>
    %424 = vector.extract_strided_slice %423 {offsets = [0, 0], sizes = [2, 32], strides = [1, 1]} : vector<2x128xf32> to vector<2x32xf32>
    %425 = arith.negf %424 : vector<2x32xf32>
    %426 = math.exp %425 : vector<2x32xf32>
    %cst_77 = arith.constant 1.000000e+00 : f32
    %427 = vector.broadcast %cst_77 : f32 to vector<2x32xf32>
    %428 = arith.addf %427, %426 : vector<2x32xf32>
    %429 = arith.divf %427, %428 : vector<2x32xf32>
    %430 = vector.extract_strided_slice %423 {offsets = [0, 32], sizes = [2, 32], strides = [1, 1]} : vector<2x128xf32> to vector<2x32xf32>
    %431 = arith.negf %430 : vector<2x32xf32>
    %432 = math.exp %431 : vector<2x32xf32>
    %cst_78 = arith.constant 1.000000e+00 : f32
    %433 = vector.broadcast %cst_78 : f32 to vector<2x32xf32>
    %434 = arith.addf %433, %432 : vector<2x32xf32>
    %435 = arith.divf %433, %434 : vector<2x32xf32>
    %436 = vector.extract_strided_slice %423 {offsets = [0, 64], sizes = [2, 32], strides = [1, 1]} : vector<2x128xf32> to vector<2x32xf32>
    %437 = math.tanh %436 : vector<2x32xf32>
    %438 = vector.extract_strided_slice %423 {offsets = [0, 96], sizes = [2, 32], strides = [1, 1]} : vector<2x128xf32> to vector<2x32xf32>
    %439 = arith.negf %438 : vector<2x32xf32>
    %440 = math.exp %439 : vector<2x32xf32>
    %cst_79 = arith.constant 1.000000e+00 : f32
    %441 = vector.broadcast %cst_79 : f32 to vector<2x32xf32>
    %442 = arith.addf %441, %440 : vector<2x32xf32>
    %443 = arith.divf %441, %442 : vector<2x32xf32>
    %444 = arith.mulf %435, %389 : vector<2x32xf32>
    %445 = arith.mulf %429, %437 : vector<2x32xf32>
    %446 = arith.addf %444, %445 : vector<2x32xf32>
    %447 = math.tanh %446 : vector<2x32xf32>
    %448 = arith.mulf %443, %447 : vector<2x32xf32>
    %449 = tpu.concatenate %448, %420 in 1 : vector<2x32xf32>, vector<2x16xf32> -> vector<2x48xf32>
    %cst_80 = arith.constant dense<0.000000e+00> : vector<2x64xf32>
    %450 = tpu.matmul %449, %16, %cst_80 {dimension_numbers = #tpu.dot_dimension_numbers<[1], [0], [0], [1], [0, 0, 1, 1], [], []>} : vector<2x48xf32>, vector<48x64xf32>, vector<2x64xf32> -> vector<2x64xf32>
    %451 = vector.broadcast %17 : vector<1x64xf32> to vector<2x64xf32>
    %452 = arith.addf %450, %451 : vector<2x64xf32>
    %453 = vector.extract_strided_slice %452 {offsets = [0, 0], sizes = [2, 16], strides = [1, 1]} : vector<2x64xf32> to vector<2x16xf32>
    %454 = arith.negf %453 : vector<2x16xf32>
    %455 = math.exp %454 : vector<2x16xf32>
    %cst_81 = arith.constant 1.000000e+00 : f32
    %456 = vector.broadcast %cst_81 : f32 to vector<2x16xf32>
    %457 = arith.addf %456, %455 : vector<2x16xf32>
    %458 = arith.divf %456, %457 : vector<2x16xf32>
    %459 = vector.extract_strided_slice %452 {offsets = [0, 16], sizes = [2, 16], strides = [1, 1]} : vector<2x64xf32> to vector<2x16xf32>
    %460 = arith.negf %459 : vector<2x16xf32>
    %461 = math.exp %460 : vector<2x16xf32>
    %cst_82 = arith.constant 1.000000e+00 : f32
    %462 = vector.broadcast %cst_82 : f32 to vector<2x16xf32>
    %463 = arith.addf %462, %461 : vector<2x16xf32>
    %464 = arith.divf %462, %463 : vector<2x16xf32>
    %465 = vector.extract_strided_slice %452 {offsets = [0, 32], sizes = [2, 16], strides = [1, 1]} : vector<2x64xf32> to vector<2x16xf32>
    %466 = math.tanh %465 : vector<2x16xf32>
    %467 = vector.extract_strided_slice %452 {offsets = [0, 48], sizes = [2, 16], strides = [1, 1]} : vector<2x64xf32> to vector<2x16xf32>
    %468 = arith.negf %467 : vector<2x16xf32>
    %469 = math.exp %468 : vector<2x16xf32>
    %cst_83 = arith.constant 1.000000e+00 : f32
    %470 = vector.broadcast %cst_83 : f32 to vector<2x16xf32>
    %471 = arith.addf %470, %469 : vector<2x16xf32>
    %472 = arith.divf %470, %471 : vector<2x16xf32>
    %473 = arith.mulf %464, %418 : vector<2x16xf32>
    %474 = arith.mulf %458, %466 : vector<2x16xf32>
    %475 = arith.addf %473, %474 : vector<2x16xf32>
    %476 = math.tanh %475 : vector<2x16xf32>
    %477 = arith.mulf %472, %476 : vector<2x16xf32>
    %c0_84 = arith.constant 0 : index
    %c0_85 = arith.constant 0 : index
    %478 = vector.load %arg8[%c0_84, %c0_85] : memref<16x5xf32, #tpu.memory_space<vmem>>, vector<16x5xf32>
    %cst_86 = arith.constant dense<0.000000e+00> : vector<2x5xf32>
    %479 = tpu.matmul %477, %478, %cst_86 {dimension_numbers = #tpu.dot_dimension_numbers<[1], [0], [0], [1], [0, 0, 1, 1], [], []>} : vector<2x16xf32>, vector<16x5xf32>, vector<2x5xf32> -> vector<2x5xf32>
    %c0_87 = arith.constant 0 : index
    %c0_88 = arith.constant 0 : index
    %480 = vector.load %arg9[%c0_87, %c0_88] : memref<1x5xf32, #tpu.memory_space<vmem>>, vector<1x5xf32>
    %481 = vector.broadcast %480 : vector<1x5xf32> to vector<2x5xf32>
    %482 = arith.addf %479, %481 : vector<2x5xf32>
    %c0_89 = arith.constant 0 : index
    %c0_90 = arith.constant 0 : index
    %483 = vector.load %arg10[%c0_89, %c0_90] : memref<2x5xf32, #tpu.memory_space<vmem>>, vector<2x5xf32>
    tpu.vector_store %arg10[%c0_89, %c0_90], %482 {strides = array<i32>} : memref<2x5xf32, #tpu.memory_space<vmem>>, vector<2x5xf32>,
    return
  }
}

</mosaic_0001>

<llo_original>
// kernel: multi_class_forward.1
$region0: #{multi_class_forward.1}
  #allocation0 [shape = 'u32[]', space=smem, size = 0x4, offset = 0x4, fixed_abs, tag = 'smem constant byte address 0x4 - core index']
  #allocation1 [shape = 'u32[144,128]{1,0:T(1,128)}', space=vmem, size = 0x12000, scoped, tag = 'internal scratch']
  %s0 = inlined_call_operand.vmem [shape: s32[16,1], index: 0, kind: input, shape index: {}]
  %s1 = inlined_call_operand.vmem [shape: f32[50,32], index: 1, kind: input, shape index: {}]
  %s2 = inlined_call_operand.vmem [shape: f32[32,128], index: 2, kind: input, shape index: {}]
  %s3 = inlined_call_operand.vmem [shape: f32[32,128], index: 3, kind: input, shape index: {}]
  %s4 = inlined_call_operand.vmem [shape: f32[1,128], index: 4, kind: input, shape index: {}]
  %s5 = inlined_call_operand.vmem [shape: f32[32,64], index: 5, kind: input, shape index: {}]
  %s6 = inlined_call_operand.vmem [shape: f32[16,64], index: 6, kind: input, shape index: {}]
  %s7 = inlined_call_operand.vmem [shape: f32[1,64], index: 7, kind: input, shape index: {}]
  %s8 = inlined_call_operand.vmem [shape: f32[16,5], index: 8, kind: input, shape index: {}]
  %s9 = inlined_call_operand.vmem [shape: f32[1,5], index: 9, kind: input, shape index: {}]
  %s10 = inlined_call_operand.hbm [shape: f32[2,5], index: 10, kind: output, shape index: {}]
  %s11 = sld [smem:[#allocation0]]
  $region50: #{multi_class_forward.1} parent=0
    _
  %s13 = ssub.s32 1, %s11
  %s14 = scalar_select 0, %s13, %s11
  $region1: #{multi_class_forward.1} parent=0
    #allocation2 [shape = 'u8[1024]{0}', space=vmem, size = 0x400, scoped, tag = 'output window, operand 0, single buffered']
    #allocation3 [shape = 's32[1]{0}', space=sflag, size = 0x4, scoped, tag = 'scoped memory for multi_class_forward.1']
    %15 = vsyncpa [#allocation3], 0
    // Predicated region
    $region2: #{multi_class_forward.1} parent=1 // pred_check
      _
    $region3: #{multi_class_forward.1} parent=1 // pred_check_branch
      %17 = sbr.rel (0) target = $region5
    $region4: #{multi_class_forward.1} parent=1 // pred_region
      _
    $region5: #{multi_class_forward.1} parent=1 // pred_fallthru
      _
    // Predicated region
    $region6: #{multi_class_forward.1} parent=1 // pred_check
      _
    $region7: #{multi_class_forward.1} parent=1 // pred_check_branch
      %19 = sbr.rel (0) target = $region9
    $region8: #{multi_class_forward.1} parent=1 // pred_region
      _
    $region9: #{multi_class_forward.1} parent=1 // pred_fallthru
      _
    // Predicated region
    $region10: #{multi_class_forward.1} parent=1 // pred_check
      _
    $region11: #{multi_class_forward.1} parent=1 // pred_check_branch
      %21 = sbr.rel (0) target = $region13
    $region12: #{multi_class_forward.1} parent=1 // pred_region
      _
    $region13: #{multi_class_forward.1} parent=1 // pred_fallthru
      _
    // Predicated region
    $region14: #{multi_class_forward.1} parent=1 // pred_check
      _
    $region15: #{multi_class_forward.1} parent=1 // pred_check_branch
      %23 = sbr.rel (0) target = $region17
    $region16: #{multi_class_forward.1} parent=1 // pred_region
      _
    $region17: #{multi_class_forward.1} parent=1 // pred_fallthru
      _
    // Predicated region
    $region18: #{multi_class_forward.1} parent=1 // pred_check
      _
    $region19: #{multi_class_forward.1} parent=1 // pred_check_branch
      %25 = sbr.rel (0) target = $region21
    $region20: #{multi_class_forward.1} parent=1 // pred_region
      _
    $region21: #{multi_class_forward.1} parent=1 // pred_fallthru
      _
    // Predicated region
    $region22: #{multi_class_forward.1} parent=1 // pred_check
      _
    $region23: #{multi_class_forward.1} parent=1 // pred_check_branch
      %27 = sbr.rel (0) target = $region25
    $region24: #{multi_class_forward.1} parent=1 // pred_region
      _
    $region25: #{multi_class_forward.1} parent=1 // pred_fallthru
      _
    // Predicated region
    $region26: #{multi_class_forward.1} parent=1 // pred_check
      _
    $region27: #{multi_class_forward.1} parent=1 // pred_check_branch
      %29 = sbr.rel (0) target = $region29
    $region28: #{multi_class_forward.1} parent=1 // pred_region
      _
    $region29: #{multi_class_forward.1} parent=1 // pred_fallthru
      _
    // Predicated region
    $region30: #{multi_class_forward.1} parent=1 // pred_check
      _
    $region31: #{multi_class_forward.1} parent=1 // pred_check_branch
      %31 = sbr.rel (0) target = $region33
    $region32: #{multi_class_forward.1} parent=1 // pred_region
      _
    $region33: #{multi_class_forward.1} parent=1 // pred_fallthru
      _
    // Predicated region
    $region34: #{multi_class_forward.1} parent=1 // pred_check
      _
    $region35: #{multi_class_forward.1} parent=1 // pred_check_branch
      %33 = sbr.rel (0) target = $region37
    $region36: #{multi_class_forward.1} parent=1 // pred_region
      _
    $region37: #{multi_class_forward.1} parent=1 // pred_fallthru
      _
    // Predicated region
    $region38: #{multi_class_forward.1} parent=1 // pred_check
      _
    $region39: #{multi_class_forward.1} parent=1 // pred_check_branch
      %35 = sbr.rel (0) target = $region41
    $region40: #{multi_class_forward.1} parent=1 // pred_region
      _
    $region41: #{multi_class_forward.1} parent=1 // pred_fallthru
      _
    %v36 = vld [vmem:[%s1] sm:$0xff]
    %v37 = vld [vmem:[%s1 + $0x8] sm:$0xff]
    %v38 = vld [vmem:[%s1 + $0x10] sm:$0xff]
    %v39 = vld [vmem:[%s1 + $0x18] sm:$0xff]
    %v40 = vld [vmem:[%s1 + $0x20] sm:$0xff]
    %v41 = vld [vmem:[%s1 + $0x28] sm:$0xff]
    %v42 = vld [vmem:[%s1 + $0x30] sm:$0x3]
    %v43 = vld [vmem:[%s2] sm:$0xff]
    %v44 = vld [vmem:[%s2 + $0x8] sm:$0xff]
    %v45 = vld [vmem:[%s2 + $0x10] sm:$0xff]
    %v46 = vld [vmem:[%s2 + $0x18] sm:$0xff]
    %vm47 = vcmask 261120
    %v49 = vsel %vm47, %v36, 0
    %v52 = vsel %vm47, %v37, 0
    %v55 = vsel %vm47, %v38, 0
    %v58 = vsel %vm47, %v39, 0
    %v61 = vsel %vm47, %v40, 0
    %v64 = vsel %vm47, %v41, 0
    %v67 = vsel %vm47, %v42, 0
    %69 = vmatprep.subr.mxu0 0.0
    %70 = vmatpush1.msra.mxu0 %v43
    %71 = vmatprep.subr.mxu0 0.0
    %72 = vmatpush1.msra.mxu0 %v44
    %73 = vmatprep.subr.mxu0 0.0
    %74 = vmatpush1.msra.mxu0 %v45
    %75 = vmatprep.subr.mxu0 0.0
    %76 = vmatpush1.msra.mxu0 %v46
    %77 = vmatprep.subr.mxu0 0.0
    %78 = vmatpush1.msra.mxu0 0.0
    %79 = vmatprep.subr.mxu0 0.0
    %80 = vmatpush1.msra.mxu0 0.0
    %81 = vmatprep.subr.mxu0 0.0
    %82 = vmatpush1.msra.mxu0 0.0
    %83 = vmatprep.subr.mxu0 0.0
    %84 = vmatpush1.msra.mxu0 0.0
    %85 = vmatprep.subr.mxu0 0.0
    %86 = vmatpush1.msra.mxu0 0.0
    %87 = vmatprep.subr.mxu0 0.0
    %88 = vmatpush1.msra.mxu0 0.0
    %89 = vmatprep.subr.mxu0 0.0
    %90 = vmatpush1.msra.mxu0 0.0
    %91 = vmatprep.subr.mxu0 0.0
    %92 = vmatpush1.msra.mxu0 0.0
    %93 = vmatprep.subr.mxu0 0.0
    %94 = vmatpush1.msra.mxu0 0.0
    %95 = vmatprep.subr.mxu0 0.0
    %96 = vmatpush1.msra.mxu0 0.0
    %97 = vmatprep.subr.mxu0 0.0
    %98 = vmatpush1.msra.mxu0 0.0
    %99 = vmatprep.subr.mxu0 0.0
    %100 = vmatpush1.msra.mxu0 0.0
    %101 = vmatprep.subr.mxu0 0.0
    %102 = vmatpush1.msra.mxu0 0.0
    %103 = vmatprep.subr.mxu0 0.0
    %104 = vmatpush1.msra.mxu0 0.0
    %105 = vmatprep.subr.mxu0 0.0
    %106 = vmatpush1.msra.mxu0 0.0
    %107 = vmatprep.subr.mxu0 0.0
    %108 = vmatpush1.msra.mxu0 0.0
    %109 = vmatprep.subr.mxu0 0.0
    %110 = vmatpush1.msra.mxu0 0.0
    %111 = vmatprep.subr.mxu0 0.0
    %112 = vmatpush1.msra.mxu0 0.0
    %113 = vmatprep.subr.mxu0 0.0
    %114 = vmatpush1.msra.mxu0 0.0
    %115 = vmatprep.subr.mxu0 0.0
    %116 = vmatpush1.msra.mxu0 0.0
    %117 = vmatprep.subr.mxu0 0.0
    %118 = vmatpush1.msra.mxu0 0.0
    %119 = vmatprep.subr.mxu0 0.0
    %120 = vmatpush1.msra.mxu0 0.0
    %121 = vmatprep.subr.mxu0 0.0
    %122 = vmatpush1.msra.mxu0 0.0
    %123 = vmatprep.subr.mxu0 0.0
    %124 = vmatpush1.msra.mxu0 0.0
    %125 = vmatprep.subr.mxu0 0.0
    %126 = vmatpush1.msra.mxu0 0.0
    %127 = vmatprep.subr.mxu0 0.0
    %128 = vmatpush1.msra.mxu0 0.0
    %129 = vmatprep.subr.mxu0 0.0
    %130 = vmatpush1.msra.mxu0 0.0
    %131 = vmatprep.subr.mxu0 0.0
    %132 = vmatpush1.msra.mxu0 0.0
    %133 = vmatprep.mubr.f32.mxu0 0.0
    %134 = vmatmul.mubr.f32.gmra.mrb[0].mxu0 %v49
    %v135 = vpop.f32.mrb[0].mxu0
    %v136 = vadd.f32 0.0, %v135
    %v137 = vpop.f32.mrb[0].mxu0
    %138 = vmatprep.mubr.f32.mxu0 0.0
    %139 = vmatmul.mubr.f32.gmra.mrb[0].mxu0 %v52
    %v140 = vpop.f32.mrb[0].mxu0
    %v141 = vadd.f32 0.0, %v140
    %v142 = vpop.f32.mrb[0].mxu0
    %143 = vmatprep.mubr.f32.mxu0 0.0
    %144 = vmatmul.mubr.f32.gmra.mrb[0].mxu0 %v55
    %v145 = vpop.f32.mrb[0].mxu0
    %v146 = vadd.f32 0.0, %v145
    %v147 = vpop.f32.mrb[0].mxu0
    %148 = vmatprep.mubr.f32.mxu0 0.0
    %149 = vmatmul.mubr.f32.gmra.mrb[0].mxu0 %v58
    %v150 = vpop.f32.mrb[0].mxu0
    %v151 = vadd.f32 0.0, %v150
    %v152 = vpop.f32.mrb[0].mxu0
    %153 = vmatprep.mubr.f32.mxu0 0.0
    %154 = vmatmul.mubr.f32.gmra.mrb[0].mxu0 %v61
    %v155 = vpop.f32.mrb[0].mxu0
    %v156 = vadd.f32 0.0, %v155
    %v157 = vpop.f32.mrb[0].mxu0
    %158 = vmatprep.mubr.f32.mxu0 0.0
    %159 = vmatmul.mubr.f32.gmra.mrb[0].mxu0 %v64
    %v160 = vpop.f32.mrb[0].mxu0
    %v161 = vadd.f32 0.0, %v160
    %v162 = vpop.f32.mrb[0].mxu0
    %163 = vmatprep.mubr.f32.mxu0 0.0
    %164 = vmatmul.mubr.f32.gmra.mrb[0].mxu0 %v67
    %v165 = vpop.f32.mrb[0].mxu0
    %v166 = vadd.f32 0.0, %v165
    %v167 = vpop.f32.mrb[0].mxu0
    %168 = vdwg.mxu0
    %v169 = vld [vmem:[%s0] sm:$0xff]
    %v170 = vld [vmem:[%s0 + $0x8] sm:$0xff]
    %v171 = vlaneseq
    %v172 = vand.u32 %v171, 127
    %173 = vset.pattern.permute.xlu0 0
    %174 = vperm.xlu0 %173, %v169
    %v175 = vpop.permute.xlu0 %174
    %176 = vset.pattern.permute.xlu0 0
    %177 = vperm.xlu0 %176, %v170
    %v178 = vpop.permute.xlu0 %177
    %vm179 = vcmp.eq.s32.totalorder %v172, %v175
    %vm180 = vcmp.eq.s32.totalorder %v172, %v178
    %v181 = vsel %vm179, 1, 0
    %v182 = vsel %vm180, 1, 0
    %v183 = vcvt.s32.f32 %v181
    %v184 = vcvt.s32.f32 %v182
    %v185 = vld [vmem:[%s4] sm:$0x1]
    %v187 = vlaneseq
    %v188 = vshrl.u32 %v187, 7
    %v189 = vsub.s32 0, %v188
    %v190 = vrot.slane %v185, %v189
    %vm192 = vcmask 408576
    %v194 = vsel %vm192, %v183, 0
    %v197 = vsel %vm192, %v184, 0
    %vm199 = vcmask 1041408
    %v201 = vsel %vm199, %v166, 0
    %203 = vmatprep.subr.mxu0 0.0
    %204 = vmatpush1.msra.mxu0 %v136
    %205 = vmatprep.subr.mxu0 0.0
    %206 = vmatpush1.msra.mxu0 %v141
    %207 = vmatprep.subr.mxu0 0.0
    %208 = vmatpush1.msra.mxu0 %v146
    %209 = vmatprep.subr.mxu0 0.0
    %210 = vmatpush1.msra.mxu0 %v151
    %211 = vmatprep.subr.mxu0 0.0
    %212 = vmatpush1.msra.mxu0 %v156
    %213 = vmatprep.subr.mxu0 0.0
    %214 = vmatpush1.msra.mxu0 %v161
    %215 = vmatprep.subr.mxu0 0.0
    %216 = vmatpush1.msra.mxu0 %v201
    %217 = vmatprep.subr.mxu0 0.0
    %218 = vmatpush1.msra.mxu0 0.0
    %219 = vmatprep.subr.mxu0 0.0
    %220 = vmatpush1.msra.mxu0 0.0
    %221 = vmatprep.subr.mxu0 0.0
    %222 = vmatpush1.msra.mxu0 0.0
    %223 = vmatprep.subr.mxu0 0.0
    %224 = vmatpush1.msra.mxu0 0.0
    %225 = vmatprep.subr.mxu0 0.0
    %226 = vmatpush1.msra.mxu0 0.0
    %227 = vmatprep.subr.mxu0 0.0
    %228 = vmatpush1.msra.mxu0 0.0
    %229 = vmatprep.subr.mxu0 0.0
    %230 = vmatpush1.msra.mxu0 0.0
    %231 = vmatprep.subr.mxu0 0.0
    %232 = vmatpush1.msra.mxu0 0.0
    %233 = vmatprep.subr.mxu0 0.0
    %234 = vmatpush1.msra.mxu0 0.0
    %235 = vmatprep.subr.mxu0 0.0
    %236 = vmatpush1.msra.mxu0 0.0
    %237 = vmatprep.subr.mxu0 0.0
    %238 = vmatpush1.msra.mxu0 0.0
    %239 = vmatprep.subr.mxu0 0.0
    %240 = vmatpush1.msra.mxu0 0.0
    %241 = vmatprep.subr.mxu0 0.0
    %242 = vmatpush1.msra.mxu0 0.0
    %243 = vmatprep.subr.mxu0 0.0
    %244 = vmatpush1.msra.mxu0 0.0
    %245 = vmatprep.subr.mxu0 0.0
    %246 = vmatpush1.msra.mxu0 0.0
    %247 = vmatprep.subr.mxu0 0.0
    %248 = vmatpush1.msra.mxu0 0.0
    %249 = vmatprep.subr.mxu0 0.0
    %250 = vmatpush1.msra.mxu0 0.0
    %251 = vmatprep.subr.mxu0 0.0
    %252 = vmatpush1.msra.mxu0 0.0
    %253 = vmatprep.subr.mxu0 0.0
    %254 = vmatpush1.msra.mxu0 0.0
    %255 = vmatprep.subr.mxu0 0.0
    %256 = vmatpush1.msra.mxu0 0.0
    %257 = vmatprep.subr.mxu0 0.0
    %258 = vmatpush1.msra.mxu0 0.0
    %259 = vmatprep.subr.mxu0 0.0
    %260 = vmatpush1.msra.mxu0 0.0
    %261 = vmatprep.subr.mxu0 0.0
    %262 = vmatpush1.msra.mxu0 0.0
    %263 = vmatprep.subr.mxu0 0.0
    %264 = vmatpush1.msra.mxu0 0.0
    %265 = vmatprep.subr.mxu0 0.0
    %266 = vmatpush1.msra.mxu0 0.0
    %267 = vmatprep.mubr.f32.mxu0 0.0
    %268 = vmatmul.mubr.f32.gmra.mrb[0].mxu0 %v194
    %v269 = vpop.f32.mrb[0].mxu0
    %v270 = vadd.f32 %v190, %v269
    %v271 = vpop.f32.mrb[0].mxu0
    %272 = vmatprep.mubr.f32.mxu0 0.0
    %273 = vmatmul.mubr.f32.gmra.mrb[0].mxu0 %v197
    %v274 = vpop.f32.mrb[0].mxu0
    %v275 = vadd.f32 %v190, %v274
    %v276 = vpop.f32.mrb[0].mxu0
    %277 = vdwg.mxu0
    %v278 = vld [vmem:[%s3] sm:$0xff]
    %v279 = vld [vmem:[%s3 + $0x8] sm:$0xff]
    %v280 = vld [vmem:[%s3 + $0x10] sm:$0xff]
    %v281 = vld [vmem:[%s3 + $0x18] sm:$0xff]
    %v282 = vld [vmem:[%s5] sm:$0xff]
    %v283 = vld [vmem:[%s5 + $0x8] sm:$0xff]
    %v284 = vld [vmem:[%s5 + $0x10] sm:$0xff]
    %v285 = vld [vmem:[%s5 + $0x18] sm:$0xff]
    %v286 = vld [vmem:[%s6] sm:$0xff]
    %v287 = vld [vmem:[%s6 + $0x8] sm:$0xff]
    %v288 = vld [vmem:[%s7] sm:$0x1]
    %v290 = vsel %vm47, 0.0, 0
    %292 = vmatprep.subr.mxu0 0.0
    %293 = vmatpush1.msra.mxu0 %v278
    %294 = vmatprep.subr.mxu0 0.0
    %295 = vmatpush1.msra.mxu0 %v279
    %296 = vmatprep.subr.mxu0 0.0
    %297 = vmatpush1.msra.mxu0 %v280
    %298 = vmatprep.subr.mxu0 0.0
    %299 = vmatpush1.msra.mxu0 %v281
    %300 = vmatprep.subr.mxu0 0.0
    %301 = vmatpush1.msra.mxu0 0.0
    %302 = vmatprep.subr.mxu0 0.0
    %303 = vmatpush1.msra.mxu0 0.0
    %304 = vmatprep.subr.mxu0 0.0
    %305 = vmatpush1.msra.mxu0 0.0
    %306 = vmatprep.subr.mxu0 0.0
    %307 = vmatpush1.msra.mxu0 0.0
    %308 = vmatprep.subr.mxu0 0.0
    %309 = vmatpush1.msra.mxu0 0.0
    %310 = vmatprep.subr.mxu0 0.0
    %311 = vmatpush1.msra.mxu0 0.0
    %312 = vmatprep.subr.mxu0 0.0
    %313 = vmatpush1.msra.mxu0 0.0
    %314 = vmatprep.subr.mxu0 0.0
    %315 = vmatpush1.msra.mxu0 0.0
    %316 = vmatprep.subr.mxu0 0.0
    %317 = vmatpush1.msra.mxu0 0.0
    %318 = vmatprep.subr.mxu0 0.0
    %319 = vmatpush1.msra.mxu0 0.0
    %320 = vmatprep.subr.mxu0 0.0
    %321 = vmatpush1.msra.mxu0 0.0
    %322 = vmatprep.subr.mxu0 0.0
    %323 = vmatpush1.msra.mxu0 0.0
    %324 = vmatprep.subr.mxu0 0.0
    %325 = vmatpush1.msra.mxu0 0.0
    %326 = vmatprep.subr.mxu0 0.0
    %327 = vmatpush1.msra.mxu0 0.0
    %328 = vmatprep.subr.mxu0 0.0
    %329 = vmatpush1.msra.mxu0 0.0
    %330 = vmatprep.subr.mxu0 0.0
    %331 = vmatpush1.msra.mxu0 0.0
    %332 = vmatprep.subr.mxu0 0.0
    %333 = vmatpush1.msra.mxu0 0.0
    %334 = vmatprep.subr.mxu0 0.0
    %335 = vmatpush1.msra.mxu0 0.0
    %336 = vmatprep.subr.mxu0 0.0
    %337 = vmatpush1.msra.mxu0 0.0
    %338 = vmatprep.subr.mxu0 0.0
    %339 = vmatpush1.msra.mxu0 0.0
    %340 = vmatprep.subr.mxu0 0.0
    %341 = vmatpush1.msra.mxu0 0.0
    %342 = vmatprep.subr.mxu0 0.0
    %343 = vmatpush1.msra.mxu0 0.0
    %344 = vmatprep.subr.mxu0 0.0
    %345 = vmatpush1.msra.mxu0 0.0
    %346 = vmatprep.subr.mxu0 0.0
    %347 = vmatpush1.msra.mxu0 0.0
    %348 = vmatprep.subr.mxu0 0.0
    %349 = vmatpush1.msra.mxu0 0.0
    %350 = vmatprep.subr.mxu0 0.0
    %351 = vmatpush1.msra.mxu0 0.0
    %352 = vmatprep.subr.mxu0 0.0
    %353 = vmatpush1.msra.mxu0 0.0
    %354 = vmatprep.subr.mxu0 0.0
    %355 = vmatpush1.msra.mxu0 0.0
    %356 = vmatprep.mubr.f32.mxu0 0.0
    %357 = vmatmul.mubr.f32.gmra.mrb[0].mxu0 %v290
    %v358 = vpop.f32.mrb[0].mxu0
    %v359 = vadd.f32 0.0, %v358
    %v360 = vpop.f32.mrb[0].mxu0
    %361 = vdwg.mxu0
    %v362 = vadd.f32 %v270, %v359
    %v363 = vxor.u32 %v362, 2147483648
    %v364 = vmul.f32 %v363, 1.442695
    %v365 = vpow.pop %v364
    %v366 = vadd.f32 %v365, 1.0
    %v367 = vrcp.pop %v366
    %v368 = vmul.f32 1.0, %v367
    %v369 = vtanh.pop %v362
    %v370 = vmul.f32 %v368, 0.0
    %372 = vrot.lane.b32.xlu0 %v369, 64
    %v373 = vpop.permute.xlu0 %372
    %v375 = vmul.f32 %v368, %v373
    %377 = vrot.lane.b32.xlu0 %v375, 32
    %v378 = vpop.permute.xlu0 %377
    %v380 = vadd.f32 %v370, %v378
    %v381 = vtanh.pop %v380
    %383 = vrot.lane.b32.xlu0 %v381, 64
    %v384 = vpop.permute.xlu0 %383
    %v386 = vmul.f32 %v368, %v384
    %388 = vrot.lane.b32.xlu0 %v386, 32
    %v389 = vpop.permute.xlu0 %388
    %v391 = vsel %vm47, %v389, 0.0
    %v393 = vlaneseq
    %v394 = vshrl.u32 %v393, 7
    %v395 = vsub.s32 0, %v394
    %v396 = vrot.slane %v288, %v395
    %vm398 = vcmask 392192
    %v400 = vsel %vm398, %v391, 0
    %402 = vmatprep.subr.mxu0 0.0
    %403 = vmatpush1.msra.mxu0 %v282
    %404 = vmatprep.subr.mxu0 0.0
    %405 = vmatpush1.msra.mxu0 %v283
    %406 = vmatprep.subr.mxu0 0.0
    %407 = vmatpush1.msra.mxu0 %v284
    %408 = vmatprep.subr.mxu0 0.0
    %409 = vmatpush1.msra.mxu0 %v285
    %410 = vmatprep.subr.mxu0 0.0
    %411 = vmatpush1.msra.mxu0 %v286
    %412 = vmatprep.subr.mxu0 0.0
    %413 = vmatpush1.msra.mxu0 %v287
    %414 = vmatprep.subr.mxu0 0.0
    %415 = vmatpush1.msra.mxu0 0.0
    %416 = vmatprep.subr.mxu0 0.0
    %417 = vmatpush1.msra.mxu0 0.0
    %418 = vmatprep.subr.mxu0 0.0
    %419 = vmatpush1.msra.mxu0 0.0
    %420 = vmatprep.subr.mxu0 0.0
    %421 = vmatpush1.msra.mxu0 0.0
    %422 = vmatprep.subr.mxu0 0.0
    %423 = vmatpush1.msra.mxu0 0.0
    %424 = vmatprep.subr.mxu0 0.0
    %425 = vmatpush1.msra.mxu0 0.0
    %426 = vmatprep.subr.mxu0 0.0
    %427 = vmatpush1.msra.mxu0 0.0
    %428 = vmatprep.subr.mxu0 0.0
    %429 = vmatpush1.msra.mxu0 0.0
    %430 = vmatprep.subr.mxu0 0.0
    %431 = vmatpush1.msra.mxu0 0.0
    %432 = vmatprep.subr.mxu0 0.0
    %433 = vmatpush1.msra.mxu0 0.0
    %434 = vmatprep.subr.mxu0 0.0
    %435 = vmatpush1.msra.mxu0 0.0
    %436 = vmatprep.subr.mxu0 0.0
    %437 = vmatpush1.msra.mxu0 0.0
    %438 = vmatprep.subr.mxu0 0.0
    %439 = vmatpush1.msra.mxu0 0.0
    %440 = vmatprep.subr.mxu0 0.0
    %441 = vmatpush1.msra.mxu0 0.0
    %442 = vmatprep.subr.mxu0 0.0
    %443 = vmatpush1.msra.mxu0 0.0
    %444 = vmatprep.subr.mxu0 0.0
    %445 = vmatpush1.msra.mxu0 0.0
    %446 = vmatprep.subr.mxu0 0.0
    %447 = vmatpush1.msra.mxu0 0.0
    %448 = vmatprep.subr.mxu0 0.0
    %449 = vmatpush1.msra.mxu0 0.0
    %450 = vmatprep.subr.mxu0 0.0
    %451 = vmatpush1.msra.mxu0 0.0
    %452 = vmatprep.subr.mxu0 0.0
    %453 = vmatpush1.msra.mxu0 0.0
    %454 = vmatprep.subr.mxu0 0.0
    %455 = vmatpush1.msra.mxu0 0.0
    %456 = vmatprep.subr.mxu0 0.0
    %457 = vmatpush1.msra.mxu0 0.0
    %458 = vmatprep.subr.mxu0 0.0
    %459 = vmatpush1.msra.mxu0 0.0
    %460 = vmatprep.subr.mxu0 0.0
    %461 = vmatpush1.msra.mxu0 0.0
    %462 = vmatprep.subr.mxu0 0.0
    %463 = vmatpush1.msra.mxu0 0.0
    %464 = vmatprep.subr.mxu0 0.0
    %465 = vmatpush1.msra.mxu0 0.0
    %466 = vmatprep.mubr.f32.mxu0 0.0
    %467 = vmatmul.mubr.f32.gmra.mrb[0].mxu0 %v400
    %v468 = vpop.f32.mrb[0].mxu0
    %v469 = vadd.f32 %v396, %v468
    %v470 = vpop.f32.mrb[0].mxu0
    %471 = vdwg.mxu0
    %v472 = vxor.u32 %v469, 2147483648
    %v473 = vmul.f32 %v472, 1.442695
    %v474 = vpow.pop %v473
    %v475 = vadd.f32 %v474, 1.0
    %v476 = vrcp.pop %v475
    %v477 = vmul.f32 1.0, %v476
    %v478 = vtanh.pop %v469
    %v479 = vmul.f32 %v477, 0.0
    %481 = vrot.lane.b32.xlu0 %v478, 96
    %v482 = vpop.permute.xlu0 %481
    %v484 = vmul.f32 %v477, %v482
    %486 = vrot.lane.b32.xlu0 %v484, 16
    %v487 = vpop.permute.xlu0 %486
    %v489 = vadd.f32 %v479, %v487
    %v490 = vtanh.pop %v489
    %492 = vrot.lane.b32.xlu0 %v490, 32
    %v493 = vpop.permute.xlu0 %492
    %v495 = vmul.f32 %v477, %v493
    %v496 = vsel %vm47, %v389, 0
    %498 = vmatprep.subr.mxu0 0.0
    %499 = vmatpush1.msra.mxu0 %v278
    %500 = vmatprep.subr.mxu0 0.0
    %501 = vmatpush1.msra.mxu0 %v279
    %502 = vmatprep.subr.mxu0 0.0
    %503 = vmatpush1.msra.mxu0 %v280
    %504 = vmatprep.subr.mxu0 0.0
    %505 = vmatpush1.msra.mxu0 %v281
    %506 = vmatprep.subr.mxu0 0.0
    %507 = vmatpush1.msra.mxu0 0.0
    %508 = vmatprep.subr.mxu0 0.0
    %509 = vmatpush1.msra.mxu0 0.0
    %510 = vmatprep.subr.mxu0 0.0
    %511 = vmatpush1.msra.mxu0 0.0
    %512 = vmatprep.subr.mxu0 0.0
    %513 = vmatpush1.msra.mxu0 0.0
    %514 = vmatprep.subr.mxu0 0.0
    %515 = vmatpush1.msra.mxu0 0.0
    %516 = vmatprep.subr.mxu0 0.0
    %517 = vmatpush1.msra.mxu0 0.0
    %518 = vmatprep.subr.mxu0 0.0
    %519 = vmatpush1.msra.mxu0 0.0
    %520 = vmatprep.subr.mxu0 0.0
    %521 = vmatpush1.msra.mxu0 0.0
    %522 = vmatprep.subr.mxu0 0.0
    %523 = vmatpush1.msra.mxu0 0.0
    %524 = vmatprep.subr.mxu0 0.0
    %525 = vmatpush1.msra.mxu0 0.0
    %526 = vmatprep.subr.mxu0 0.0
    %527 = vmatpush1.msra.mxu0 0.0
    %528 = vmatprep.subr.mxu0 0.0
    %529 = vmatpush1.msra.mxu0 0.0
    %530 = vmatprep.subr.mxu0 0.0
    %531 = vmatpush1.msra.mxu0 0.0
    %532 = vmatprep.subr.mxu0 0.0
    %533 = vmatpush1.msra.mxu0 0.0
    %534 = vmatprep.subr.mxu0 0.0
    %535 = vmatpush1.msra.mxu0 0.0
    %536 = vmatprep.subr.mxu0 0.0
    %537 = vmatpush1.msra.mxu0 0.0
    %538 = vmatprep.subr.mxu0 0.0
    %539 = vmatpush1.msra.mxu0 0.0
    %540 = vmatprep.subr.mxu0 0.0
    %541 = vmatpush1.msra.mxu0 0.0
    %542 = vmatprep.subr.mxu0 0.0
    %543 = vmatpush1.msra.mxu0 0.0
    %544 = vmatprep.subr.mxu0 0.0
    %545 = vmatpush1.msra.mxu0 0.0
    %546 = vmatprep.subr.mxu0 0.0
    %547 = vmatpush1.msra.mxu0 0.0
    %548 = vmatprep.subr.mxu0 0.0
    %549 = vmatpush1.msra.mxu0 0.0
    %550 = vmatprep.subr.mxu0 0.0
    %551 = vmatpush1.msra.mxu0 0.0
    %552 = vmatprep.subr.mxu0 0.0
    %553 = vmatpush1.msra.mxu0 0.0
    %554 = vmatprep.subr.mxu0 0.0
    %555 = vmatpush1.msra.mxu0 0.0
    %556 = vmatprep.subr.mxu0 0.0
    %557 = vmatpush1.msra.mxu0 0.0
    %558 = vmatprep.subr.mxu0 0.0
    %559 = vmatpush1.msra.mxu0 0.0
    %560 = vmatprep.subr.mxu0 0.0
    %561 = vmatpush1.msra.mxu0 0.0
    %562 = vmatprep.mubr.f32.mxu0 0.0
    %563 = vmatmul.mubr.f32.gmra.mrb[0].mxu0 %v496
    %v564 = vpop.f32.mrb[0].mxu0
    %v565 = vadd.f32 0.0, %v564
    %v566 = vpop.f32.mrb[0].mxu0
    %567 = vdwg.mxu0
    %v569 = vrot.slane %v565, 6
    %v571 = vadd.f32 %v270, %v569
    %v572 = vxor.u32 %v571, 2147483648
    %v573 = vmul.f32 %v572, 1.442695
    %v574 = vpow.pop %v573
    %v575 = vadd.f32 %v574, 1.0
    %v576 = vrcp.pop %v575
    %v577 = vmul.f32 1.0, %v576
    %v578 = vtanh.pop %v571
    %v580 = vrot.slane %v380, 6
    %v582 = vmul.f32 %v577, %v580
    %584 = vrot.lane.b32.xlu0 %v578, 64
    %v585 = vpop.permute.xlu0 %584
    %v587 = vmul.f32 %v577, %v585
    %589 = vrot.lane.b32.xlu0 %v587, 32
    %v590 = vpop.permute.xlu0 %589
    %v592 = vadd.f32 %v582, %v590
    %v593 = vtanh.pop %v592
    %595 = vrot.lane.b32.xlu0 %v593, 64
    %v596 = vpop.permute.xlu0 %595
    %v598 = vmul.f32 %v577, %v596
    %600 = vrot.lane.b32.xlu0 %v598, 32
    %v601 = vpop.permute.xlu0 %600
    %v604 = vrot.slane %v495, 6
    %605 = vrot.lane.b32.xlu0 %v604, 112
    %v606 = vpop.permute.xlu0 %605
    %v608 = vsel %vm47, %v601, %v606
    %v610 = vrot.slane %v608, 2
    %v611 = vsel %vm398, %v610, 0
    %613 = vmatprep.subr.mxu0 0.0
    %614 = vmatpush1.msra.mxu0 %v282
    %615 = vmatprep.subr.mxu0 0.0
    %616 = vmatpush1.msra.mxu0 %v283
    %617 = vmatprep.subr.mxu0 0.0
    %618 = vmatpush1.msra.mxu0 %v284
    %619 = vmatprep.subr.mxu0 0.0
    %620 = vmatpush1.msra.mxu0 %v285
    %621 = vmatprep.subr.mxu0 0.0
    %622 = vmatpush1.msra.mxu0 %v286
    %623 = vmatprep.subr.mxu0 0.0
    %624 = vmatpush1.msra.mxu0 %v287
    %625 = vmatprep.subr.mxu0 0.0
    %626 = vmatpush1.msra.mxu0 0.0
    %627 = vmatprep.subr.mxu0 0.0
    %628 = vmatpush1.msra.mxu0 0.0
    %629 = vmatprep.subr.mxu0 0.0
    %630 = vmatpush1.msra.mxu0 0.0
    %631 = vmatprep.subr.mxu0 0.0
    %632 = vmatpush1.msra.mxu0 0.0
    %633 = vmatprep.subr.mxu0 0.0
    %634 = vmatpush1.msra.mxu0 0.0
    %635 = vmatprep.subr.mxu0 0.0
    %636 = vmatpush1.msra.mxu0 0.0
    %637 = vmatprep.subr.mxu0 0.0
    %638 = vmatpush1.msra.mxu0 0.0
    %639 = vmatprep.subr.mxu0 0.0
    %640 = vmatpush1.msra.mxu0 0.0
    %641 = vmatprep.subr.mxu0 0.0
    %642 = vmatpush1.msra.mxu0 0.0
    %643 = vmatprep.subr.mxu0 0.0
    %644 = vmatpush1.msra.mxu0 0.0
    %645 = vmatprep.subr.mxu0 0.0
    %646 = vmatpush1.msra.mxu0 0.0
    %647 = vmatprep.subr.mxu0 0.0
    %648 = vmatpush1.msra.mxu0 0.0
    %649 = vmatprep.subr.mxu0 0.0
    %650 = vmatpush1.msra.mxu0 0.0
    %651 = vmatprep.subr.mxu0 0.0
    %652 = vmatpush1.msra.mxu0 0.0
    %653 = vmatprep.subr.mxu0 0.0
    %654 = vmatpush1.msra.mxu0 0.0
    %655 = vmatprep.subr.mxu0 0.0
    %656 = vmatpush1.msra.mxu0 0.0
    %657 = vmatprep.subr.mxu0 0.0
    %658 = vmatpush1.msra.mxu0 0.0
    %659 = vmatprep.subr.mxu0 0.0
    %660 = vmatpush1.msra.mxu0 0.0
    %661 = vmatprep.subr.mxu0 0.0
    %662 = vmatpush1.msra.mxu0 0.0
    %663 = vmatprep.subr.mxu0 0.0
    %664 = vmatpush1.msra.mxu0 0.0
    %665 = vmatprep.subr.mxu0 0.0
    %666 = vmatpush1.msra.mxu0 0.0
    %667 = vmatprep.subr.mxu0 0.0
    %668 = vmatpush1.msra.mxu0 0.0
    %669 = vmatprep.subr.mxu0 0.0
    %670 = vmatpush1.msra.mxu0 0.0
    %671 = vmatprep.subr.mxu0 0.0
    %672 = vmatpush1.msra.mxu0 0.0
    %673 = vmatprep.subr.mxu0 0.0
    %674 = vmatpush1.msra.mxu0 0.0
    %675 = vmatprep.subr.mxu0 0.0
    %676 = vmatpush1.msra.mxu0 0.0
    %677 = vmatprep.mubr.f32.mxu0 0.0
    %678 = vmatmul.mubr.f32.gmra.mrb[0].mxu0 %v611
    %v679 = vpop.f32.mrb[0].mxu0
    %v680 = vadd.f32 %v396, %v679
    %v681 = vpop.f32.mrb[0].mxu0
    %682 = vdwg.mxu0
    %v683 = vxor.u32 %v680, 2147483648
    %v684 = vmul.f32 %v683, 1.442695
    %v685 = vpow.pop %v684
    %v686 = vadd.f32 %v685, 1.0
    %v687 = vrcp.pop %v686
    %v688 = vmul.f32 1.0, %v687
    %v689 = vtanh.pop %v680
    %v690 = vmul.f32 %v688, %v489
    %692 = vrot.lane.b32.xlu0 %v689, 96
    %v693 = vpop.permute.xlu0 %692
    %v695 = vmul.f32 %v688, %v693
    %697 = vrot.lane.b32.xlu0 %v695, 16
    %v698 = vpop.permute.xlu0 %697
    %v700 = vadd.f32 %v690, %v698
    %v701 = vtanh.pop %v700
    %703 = vrot.lane.b32.xlu0 %v701, 32
    %v704 = vpop.permute.xlu0 %703
    %v706 = vmul.f32 %v688, %v704
    %v707 = vrot.slane %v598, 2
    %708 = vrot.lane.b32.xlu0 %v707, 32
    %v709 = vpop.permute.xlu0 %708
    %v710 = vsel %vm47, %v709, 0
    %712 = vmatprep.subr.mxu0 0.0
    %713 = vmatpush1.msra.mxu0 %v278
    %714 = vmatprep.subr.mxu0 0.0
    %715 = vmatpush1.msra.mxu0 %v279
    %716 = vmatprep.subr.mxu0 0.0
    %717 = vmatpush1.msra.mxu0 %v280
    %718 = vmatprep.subr.mxu0 0.0
    %719 = vmatpush1.msra.mxu0 %v281
    %720 = vmatprep.subr.mxu0 0.0
    %721 = vmatpush1.msra.mxu0 0.0
    %722 = vmatprep.subr.mxu0 0.0
    %723 = vmatpush1.msra.mxu0 0.0
    %724 = vmatprep.subr.mxu0 0.0
    %725 = vmatpush1.msra.mxu0 0.0
    %726 = vmatprep.subr.mxu0 0.0
    %727 = vmatpush1.msra.mxu0 0.0
    %728 = vmatprep.subr.mxu0 0.0
    %729 = vmatpush1.msra.mxu0 0.0
    %730 = vmatprep.subr.mxu0 0.0
    %731 = vmatpush1.msra.mxu0 0.0
    %732 = vmatprep.subr.mxu0 0.0
    %733 = vmatpush1.msra.mxu0 0.0
    %734 = vmatprep.subr.mxu0 0.0
    %735 = vmatpush1.msra.mxu0 0.0
    %736 = vmatprep.subr.mxu0 0.0
    %737 = vmatpush1.msra.mxu0 0.0
    %738 = vmatprep.subr.mxu0 0.0
    %739 = vmatpush1.msra.mxu0 0.0
    %740 = vmatprep.subr.mxu0 0.0
    %741 = vmatpush1.msra.mxu0 0.0
    %742 = vmatprep.subr.mxu0 0.0
    %743 = vmatpush1.msra.mxu0 0.0
    %744 = vmatprep.subr.mxu0 0.0
    %745 = vmatpush1.msra.mxu0 0.0
    %746 = vmatprep.subr.mxu0 0.0
    %747 = vmatpush1.msra.mxu0 0.0
    %748 = vmatprep.subr.mxu0 0.0
    %749 = vmatpush1.msra.mxu0 0.0
    %750 = vmatprep.subr.mxu0 0.0
    %751 = vmatpush1.msra.mxu0 0.0
    %752 = vmatprep.subr.mxu0 0.0
    %753 = vmatpush1.msra.mxu0 0.0
    %754 = vmatprep.subr.mxu0 0.0
    %755 = vmatpush1.msra.mxu0 0.0
    %756 = vmatprep.subr.mxu0 0.0
    %757 = vmatpush1.msra.mxu0 0.0
    %758 = vmatprep.subr.mxu0 0.0
    %759 = vmatpush1.msra.mxu0 0.0
    %760 = vmatprep.subr.mxu0 0.0
    %761 = vmatpush1.msra.mxu0 0.0
    %762 = vmatprep.subr.mxu0 0.0
    %763 = vmatpush1.msra.mxu0 0.0
    %764 = vmatprep.subr.mxu0 0.0
    %765 = vmatpush1.msra.mxu0 0.0
    %766 = vmatprep.subr.mxu0 0.0
    %767 = vmatpush1.msra.mxu0 0.0
    %768 = vmatprep.subr.mxu0 0.0
    %769 = vmatpush1.msra.mxu0 0.0
    %770 = vmatprep.subr.mxu0 0.0
    %771 = vmatpush1.msra.mxu0 0.0
    %772 = vmatprep.subr.mxu0 0.0
    %773 = vmatpush1.msra.mxu0 0.0
    %774 = vmatprep.subr.mxu0 0.0
    %775 = vmatpush1.msra.mxu0 0.0
    %776 = vmatprep.mubr.f32.mxu0 0.0
    %777 = vmatmul.mubr.f32.gmra.mrb[0].mxu0 %v710
    %v778 = vpop.f32.mrb[0].mxu0
    %v779 = vadd.f32 0.0, %v778
    %v780 = vpop.f32.mrb[0].mxu0
    %781 = vdwg.mxu0
    %v783 = vrot.slane %v779, 4
    %v785 = vadd.f32 %v270, %v783
    %v786 = vxor.u32 %v785, 2147483648
    %v787 = vmul.f32 %v786, 1.442695
    %v788 = vpow.pop %v787
    %v789 = vadd.f32 %v788, 1.0
    %v790 = vrcp.pop %v789
    %v791 = vmul.f32 1.0, %v790
    %v792 = vtanh.pop %v785
    %v794 = vrot.slane %v592, 6
    %v796 = vmul.f32 %v791, %v794
    %798 = vrot.lane.b32.xlu0 %v792, 64
    %v799 = vpop.permute.xlu0 %798
    %v801 = vmul.f32 %v791, %v799
    %803 = vrot.lane.b32.xlu0 %v801, 32
    %v804 = vpop.permute.xlu0 %803
    %v806 = vadd.f32 %v796, %v804
    %v807 = vtanh.pop %v806
    %809 = vrot.lane.b32.xlu0 %v807, 64
    %v810 = vpop.permute.xlu0 %809
    %v812 = vmul.f32 %v791, %v810
    %814 = vrot.lane.b32.xlu0 %v812, 32
    %v815 = vpop.permute.xlu0 %814
    %v818 = vrot.slane %v706, 4
    %819 = vrot.lane.b32.xlu0 %v818, 112
    %v820 = vpop.permute.xlu0 %819
    %v822 = vsel %vm47, %v815, %v820
    %v824 = vrot.slane %v822, 4
    %v825 = vsel %vm398, %v824, 0
    %827 = vmatprep.subr.mxu0 0.0
    %828 = vmatpush1.msra.mxu0 %v282
    %829 = vmatprep.subr.mxu0 0.0
    %830 = vmatpush1.msra.mxu0 %v283
    %831 = vmatprep.subr.mxu0 0.0
    %832 = vmatpush1.msra.mxu0 %v284
    %833 = vmatprep.subr.mxu0 0.0
    %834 = vmatpush1.msra.mxu0 %v285
    %835 = vmatprep.subr.mxu0 0.0
    %836 = vmatpush1.msra.mxu0 %v286
    %837 = vmatprep.subr.mxu0 0.0
    %838 = vmatpush1.msra.mxu0 %v287
    %839 = vmatprep.subr.mxu0 0.0
    %840 = vmatpush1.msra.mxu0 0.0
    %841 = vmatprep.subr.mxu0 0.0
    %842 = vmatpush1.msra.mxu0 0.0
    %843 = vmatprep.subr.mxu0 0.0
    %844 = vmatpush1.msra.mxu0 0.0
    %845 = vmatprep.subr.mxu0 0.0
    %846 = vmatpush1.msra.mxu0 0.0
    %847 = vmatprep.subr.mxu0 0.0
    %848 = vmatpush1.msra.mxu0 0.0
    %849 = vmatprep.subr.mxu0 0.0
    %850 = vmatpush1.msra.mxu0 0.0
    %851 = vmatprep.subr.mxu0 0.0
    %852 = vmatpush1.msra.mxu0 0.0
    %853 = vmatprep.subr.mxu0 0.0
    %854 = vmatpush1.msra.mxu0 0.0
    %855 = vmatprep.subr.mxu0 0.0
    %856 = vmatpush1.msra.mxu0 0.0
    %857 = vmatprep.subr.mxu0 0.0
    %858 = vmatpush1.msra.mxu0 0.0
    %859 = vmatprep.subr.mxu0 0.0
    %860 = vmatpush1.msra.mxu0 0.0
    %861 = vmatprep.subr.mxu0 0.0
    %862 = vmatpush1.msra.mxu0 0.0
    %863 = vmatprep.subr.mxu0 0.0
    %864 = vmatpush1.msra.mxu0 0.0
    %865 = vmatprep.subr.mxu0 0.0
    %866 = vmatpush1.msra.mxu0 0.0
    %867 = vmatprep.subr.mxu0 0.0
    %868 = vmatpush1.msra.mxu0 0.0
    %869 = vmatprep.subr.mxu0 0.0
    %870 = vmatpush1.msra.mxu0 0.0
    %871 = vmatprep.subr.mxu0 0.0
    %872 = vmatpush1.msra.mxu0 0.0
    %873 = vmatprep.subr.mxu0 0.0
    %874 = vmatpush1.msra.mxu0 0.0
    %875 = vmatprep.subr.mxu0 0.0
    %876 = vmatpush1.msra.mxu0 0.0
    %877 = vmatprep.subr.mxu0 0.0
    %878 = vmatpush1.msra.mxu0 0.0
    %879 = vmatprep.subr.mxu0 0.0
    %880 = vmatpush1.msra.mxu0 0.0
    %881 = vmatprep.subr.mxu0 0.0
    %882 = vmatpush1.msra.mxu0 0.0
    %883 = vmatprep.subr.mxu0 0.0
    %884 = vmatpush1.msra.mxu0 0.0
    %885 = vmatprep.subr.mxu0 0.0
    %886 = vmatpush1.msra.mxu0 0.0
    %887 = vmatprep.subr.mxu0 0.0
    %888 = vmatpush1.msra.mxu0 0.0
    %889 = vmatprep.subr.mxu0 0.0
    %890 = vmatpush1.msra.mxu0 0.0
    %891 = vmatprep.mubr.f32.mxu0 0.0
    %892 = vmatmul.mubr.f32.gmra.mrb[0].mxu0 %v825
    %v893 = vpop.f32.mrb[0].mxu0
    %v894 = vadd.f32 %v396, %v893
    %v895 = vpop.f32.mrb[0].mxu0
    %896 = vdwg.mxu0
    %v897 = vxor.u32 %v894, 2147483648
    %v898 = vmul.f32 %v897, 1.442695
    %v899 = vpow.pop %v898
    %v900 = vadd.f32 %v899, 1.0
    %v901 = vrcp.pop %v900
    %v902 = vmul.f32 1.0, %v901
    %v903 = vtanh.pop %v894
    %v904 = vmul.f32 %v902, %v700
    %906 = vrot.lane.b32.xlu0 %v903, 96
    %v907 = vpop.permute.xlu0 %906
    %v909 = vmul.f32 %v902, %v907
    %911 = vrot.lane.b32.xlu0 %v909, 16
    %v912 = vpop.permute.xlu0 %911
    %v914 = vadd.f32 %v904, %v912
    %v915 = vtanh.pop %v914
    %917 = vrot.lane.b32.xlu0 %v915, 32
    %v918 = vpop.permute.xlu0 %917
    %v920 = vmul.f32 %v902, %v918
    %v921 = vrot.slane %v812, 4
    %922 = vrot.lane.b32.xlu0 %v921, 32
    %v923 = vpop.permute.xlu0 %922
    %v924 = vsel %vm47, %v923, 0
    %926 = vmatprep.subr.mxu0 0.0
    %927 = vmatpush1.msra.mxu0 %v278
    %928 = vmatprep.subr.mxu0 0.0
    %929 = vmatpush1.msra.mxu0 %v279
    %930 = vmatprep.subr.mxu0 0.0
    %931 = vmatpush1.msra.mxu0 %v280
    %932 = vmatprep.subr.mxu0 0.0
    %933 = vmatpush1.msra.mxu0 %v281
    %934 = vmatprep.subr.mxu0 0.0
    %935 = vmatpush1.msra.mxu0 0.0
    %936 = vmatprep.subr.mxu0 0.0
    %937 = vmatpush1.msra.mxu0 0.0
    %938 = vmatprep.subr.mxu0 0.0
    %939 = vmatpush1.msra.mxu0 0.0
    %940 = vmatprep.subr.mxu0 0.0
    %941 = vmatpush1.msra.mxu0 0.0
    %942 = vmatprep.subr.mxu0 0.0
    %943 = vmatpush1.msra.mxu0 0.0
    %944 = vmatprep.subr.mxu0 0.0
    %945 = vmatpush1.msra.mxu0 0.0
    %946 = vmatprep.subr.mxu0 0.0
    %947 = vmatpush1.msra.mxu0 0.0
    %948 = vmatprep.subr.mxu0 0.0
    %949 = vmatpush1.msra.mxu0 0.0
    %950 = vmatprep.subr.mxu0 0.0
    %951 = vmatpush1.msra.mxu0 0.0
    %952 = vmatprep.subr.mxu0 0.0
    %953 = vmatpush1.msra.mxu0 0.0
    %954 = vmatprep.subr.mxu0 0.0
    %955 = vmatpush1.msra.mxu0 0.0
    %956 = vmatprep.subr.mxu0 0.0
    %957 = vmatpush1.msra.mxu0 0.0
    %958 = vmatprep.subr.mxu0 0.0
    %959 = vmatpush1.msra.mxu0 0.0
    %960 = vmatprep.subr.mxu0 0.0
    %961 = vmatpush1.msra.mxu0 0.0
    %962 = vmatprep.subr.mxu0 0.0
    %963 = vmatpush1.msra.mxu0 0.0
    %964 = vmatprep.subr.mxu0 0.0
    %965 = vmatpush1.msra.mxu0 0.0
    %966 = vmatprep.subr.mxu0 0.0
    %967 = vmatpush1.msra.mxu0 0.0
    %968 = vmatprep.subr.mxu0 0.0
    %969 = vmatpush1.msra.mxu0 0.0
    %970 = vmatprep.subr.mxu0 0.0
    %971 = vmatpush1.msra.mxu0 0.0
    %972 = vmatprep.subr.mxu0 0.0
    %973 = vmatpush1.msra.mxu0 0.0
    %974 = vmatprep.subr.mxu0 0.0
    %975 = vmatpush1.msra.mxu0 0.0
    %976 = vmatprep.subr.mxu0 0.0
    %977 = vmatpush1.msra.mxu0 0.0
    %978 = vmatprep.subr.mxu0 0.0
    %979 = vmatpush1.msra.mxu0 0.0
    %980 = vmatprep.subr.mxu0 0.0
    %981 = vmatpush1.msra.mxu0 0.0
    %982 = vmatprep.subr.mxu0 0.0
    %983 = vmatpush1.msra.mxu0 0.0
    %984 = vmatprep.subr.mxu0 0.0
    %985 = vmatpush1.msra.mxu0 0.0
    %986 = vmatprep.subr.mxu0 0.0
    %987 = vmatpush1.msra.mxu0 0.0
    %988 = vmatprep.subr.mxu0 0.0
    %989 = vmatpush1.msra.mxu0 0.0
    %990 = vmatprep.mubr.f32.mxu0 0.0
    %991 = vmatmul.mubr.f32.gmra.mrb[0].mxu0 %v924
    %v992 = vpop.f32.mrb[0].mxu0
    %v993 = vadd.f32 0.0, %v992
    %v994 = vpop.f32.mrb[0].mxu0
    %995 = vdwg.mxu0
    %v997 = vrot.slane %v993, 2
    %v999 = vadd.f32 %v270, %v997
    %v1000 = vxor.u32 %v999, 2147483648
    %v1001 = vmul.f32 %v1000, 1.442695
    %v1002 = vpow.pop %v1001
    %v1003 = vadd.f32 %v1002, 1.0
    %v1004 = vrcp.pop %v1003
    %v1005 = vmul.f32 1.0, %v1004
    %v1006 = vtanh.pop %v999
    %v1008 = vrot.slane %v806, 6
    %v1010 = vmul.f32 %v1005, %v1008
    %1012 = vrot.lane.b32.xlu0 %v1006, 64
    %v1013 = vpop.permute.xlu0 %1012
    %v1015 = vmul.f32 %v1005, %v1013
    %1017 = vrot.lane.b32.xlu0 %v1015, 32
    %v1018 = vpop.permute.xlu0 %1017
    %v1020 = vadd.f32 %v1010, %v1018
    %v1021 = vtanh.pop %v1020
    %1023 = vrot.lane.b32.xlu0 %v1021, 64
    %v1024 = vpop.permute.xlu0 %1023
    %v1026 = vmul.f32 %v1005, %v1024
    %1028 = vrot.lane.b32.xlu0 %v1026, 32
    %v1029 = vpop.permute.xlu0 %1028
    %v1032 = vrot.slane %v920, 2
    %1033 = vrot.lane.b32.xlu0 %v1032, 112
    %v1034 = vpop.permute.xlu0 %1033
    %v1036 = vsel %vm47, %v1029, %v1034
    %v1038 = vrot.slane %v1036, 6
    %v1039 = vsel %vm398, %v1038, 0
    %1041 = vmatprep.subr.mxu0 0.0
    %1042 = vmatpush1.msra.mxu0 %v282
    %1043 = vmatprep.subr.mxu0 0.0
    %1044 = vmatpush1.msra.mxu0 %v283
    %1045 = vmatprep.subr.mxu0 0.0
    %1046 = vmatpush1.msra.mxu0 %v284
    %1047 = vmatprep.subr.mxu0 0.0
    %1048 = vmatpush1.msra.mxu0 %v285
    %1049 = vmatprep.subr.mxu0 0.0
    %1050 = vmatpush1.msra.mxu0 %v286
    %1051 = vmatprep.subr.mxu0 0.0
    %1052 = vmatpush1.msra.mxu0 %v287
    %1053 = vmatprep.subr.mxu0 0.0
    %1054 = vmatpush1.msra.mxu0 0.0
    %1055 = vmatprep.subr.mxu0 0.0
    %1056 = vmatpush1.msra.mxu0 0.0
    %1057 = vmatprep.subr.mxu0 0.0
    %1058 = vmatpush1.msra.mxu0 0.0
    %1059 = vmatprep.subr.mxu0 0.0
    %1060 = vmatpush1.msra.mxu0 0.0
    %1061 = vmatprep.subr.mxu0 0.0
    %1062 = vmatpush1.msra.mxu0 0.0
    %1063 = vmatprep.subr.mxu0 0.0
    %1064 = vmatpush1.msra.mxu0 0.0
    %1065 = vmatprep.subr.mxu0 0.0
    %1066 = vmatpush1.msra.mxu0 0.0
    %1067 = vmatprep.subr.mxu0 0.0
    %1068 = vmatpush1.msra.mxu0 0.0
    %1069 = vmatprep.subr.mxu0 0.0
    %1070 = vmatpush1.msra.mxu0 0.0
    %1071 = vmatprep.subr.mxu0 0.0
    %1072 = vmatpush1.msra.mxu0 0.0
    %1073 = vmatprep.subr.mxu0 0.0
    %1074 = vmatpush1.msra.mxu0 0.0
    %1075 = vmatprep.subr.mxu0 0.0
    %1076 = vmatpush1.msra.mxu0 0.0
    %1077 = vmatprep.subr.mxu0 0.0
    %1078 = vmatpush1.msra.mxu0 0.0
    %1079 = vmatprep.subr.mxu0 0.0
    %1080 = vmatpush1.msra.mxu0 0.0
    %1081 = vmatprep.subr.mxu0 0.0
    %1082 = vmatpush1.msra.mxu0 0.0
    %1083 = vmatprep.subr.mxu0 0.0
    %1084 = vmatpush1.msra.mxu0 0.0
    %1085 = vmatprep.subr.mxu0 0.0
    %1086 = vmatpush1.msra.mxu0 0.0
    %1087 = vmatprep.subr.mxu0 0.0
    %1088 = vmatpush1.msra.mxu0 0.0
    %1089 = vmatprep.subr.mxu0 0.0
    %1090 = vmatpush1.msra.mxu0 0.0
    %1091 = vmatprep.subr.mxu0 0.0
    %1092 = vmatpush1.msra.mxu0 0.0
    %1093 = vmatprep.subr.mxu0 0.0
    %1094 = vmatpush1.msra.mxu0 0.0
    %1095 = vmatprep.subr.mxu0 0.0
    %1096 = vmatpush1.msra.mxu0 0.0
    %1097 = vmatprep.subr.mxu0 0.0
    %1098 = vmatpush1.msra.mxu0 0.0
    %1099 = vmatprep.subr.mxu0 0.0
    %1100 = vmatpush1.msra.mxu0 0.0
    %1101 = vmatprep.subr.mxu0 0.0
    %1102 = vmatpush1.msra.mxu0 0.0
    %1103 = vmatprep.subr.mxu0 0.0
    %1104 = vmatpush1.msra.mxu0 0.0
    %1105 = vmatprep.mubr.f32.mxu0 0.0
    %1106 = vmatmul.mubr.f32.gmra.mrb[0].mxu0 %v1039
    %v1107 = vpop.f32.mrb[0].mxu0
    %v1108 = vadd.f32 %v396, %v1107
    %v1109 = vpop.f32.mrb[0].mxu0
    %1110 = vdwg.mxu0
    %v1111 = vxor.u32 %v1108, 2147483648
    %v1112 = vmul.f32 %v1111, 1.442695
    %v1113 = vpow.pop %v1112
    %v1114 = vadd.f32 %v1113, 1.0
    %v1115 = vrcp.pop %v1114
    %v1116 = vmul.f32 1.0, %v1115
    %v1117 = vtanh.pop %v1108
    %v1118 = vmul.f32 %v1116, %v914
    %1120 = vrot.lane.b32.xlu0 %v1117, 96
    %v1121 = vpop.permute.xlu0 %1120
    %v1123 = vmul.f32 %v1116, %v1121
    %1125 = vrot.lane.b32.xlu0 %v1123, 16
    %v1126 = vpop.permute.xlu0 %1125
    %v1128 = vadd.f32 %v1118, %v1126
    %v1129 = vtanh.pop %v1128
    %1131 = vrot.lane.b32.xlu0 %v1129, 32
    %v1132 = vpop.permute.xlu0 %1131
    %v1134 = vmul.f32 %v1116, %v1132
    %v1135 = vrot.slane %v1026, 6
    %1136 = vrot.lane.b32.xlu0 %v1135, 32
    %v1137 = vpop.permute.xlu0 %1136
    %v1138 = vsel %vm47, %v1137, 0
    %1140 = vmatprep.subr.mxu0 0.0
    %1141 = vmatpush1.msra.mxu0 %v278
    %1142 = vmatprep.subr.mxu0 0.0
    %1143 = vmatpush1.msra.mxu0 %v279
    %1144 = vmatprep.subr.mxu0 0.0
    %1145 = vmatpush1.msra.mxu0 %v280
    %1146 = vmatprep.subr.mxu0 0.0
    %1147 = vmatpush1.msra.mxu0 %v281
    %1148 = vmatprep.subr.mxu0 0.0
    %1149 = vmatpush1.msra.mxu0 0.0
    %1150 = vmatprep.subr.mxu0 0.0
    %1151 = vmatpush1.msra.mxu0 0.0
    %1152 = vmatprep.subr.mxu0 0.0
    %1153 = vmatpush1.msra.mxu0 0.0
    %1154 = vmatprep.subr.mxu0 0.0
    %1155 = vmatpush1.msra.mxu0 0.0
    %1156 = vmatprep.subr.mxu0 0.0
    %1157 = vmatpush1.msra.mxu0 0.0
    %1158 = vmatprep.subr.mxu0 0.0
    %1159 = vmatpush1.msra.mxu0 0.0
    %1160 = vmatprep.subr.mxu0 0.0
    %1161 = vmatpush1.msra.mxu0 0.0
    %1162 = vmatprep.subr.mxu0 0.0
    %1163 = vmatpush1.msra.mxu0 0.0
    %1164 = vmatprep.subr.mxu0 0.0
    %1165 = vmatpush1.msra.mxu0 0.0
    %1166 = vmatprep.subr.mxu0 0.0
    %1167 = vmatpush1.msra.mxu0 0.0
    %1168 = vmatprep.subr.mxu0 0.0
    %1169 = vmatpush1.msra.mxu0 0.0
    %1170 = vmatprep.subr.mxu0 0.0
    %1171 = vmatpush1.msra.mxu0 0.0
    %1172 = vmatprep.subr.mxu0 0.0
    %1173 = vmatpush1.msra.mxu0 0.0
    %1174 = vmatprep.subr.mxu0 0.0
    %1175 = vmatpush1.msra.mxu0 0.0
    %1176 = vmatprep.subr.mxu0 0.0
    %1177 = vmatpush1.msra.mxu0 0.0
    %1178 = vmatprep.subr.mxu0 0.0
    %1179 = vmatpush1.msra.mxu0 0.0
    %1180 = vmatprep.subr.mxu0 0.0
    %1181 = vmatpush1.msra.mxu0 0.0
    %1182 = vmatprep.subr.mxu0 0.0
    %1183 = vmatpush1.msra.mxu0 0.0
    %1184 = vmatprep.subr.mxu0 0.0
    %1185 = vmatpush1.msra.mxu0 0.0
    %1186 = vmatprep.subr.mxu0 0.0
    %1187 = vmatpush1.msra.mxu0 0.0
    %1188 = vmatprep.subr.mxu0 0.0
    %1189 = vmatpush1.msra.mxu0 0.0
    %1190 = vmatprep.subr.mxu0 0.0
    %1191 = vmatpush1.msra.mxu0 0.0
    %1192 = vmatprep.subr.mxu0 0.0
    %1193 = vmatpush1.msra.mxu0 0.0
    %1194 = vmatprep.subr.mxu0 0.0
    %1195 = vmatpush1.msra.mxu0 0.0
    %1196 = vmatprep.subr.mxu0 0.0
    %1197 = vmatpush1.msra.mxu0 0.0
    %1198 = vmatprep.subr.mxu0 0.0
    %1199 = vmatpush1.msra.mxu0 0.0
    %1200 = vmatprep.subr.mxu0 0.0
    %1201 = vmatpush1.msra.mxu0 0.0
    %1202 = vmatprep.subr.mxu0 0.0
    %1203 = vmatpush1.msra.mxu0 0.0
    %1204 = vmatprep.mubr.f32.mxu0 0.0
    %1205 = vmatmul.mubr.f32.gmra.mrb[0].mxu0 %v1138
    %v1206 = vpop.f32.mrb[0].mxu0
    %v1207 = vadd.f32 0.0, %v1206
    %v1208 = vpop.f32.mrb[0].mxu0
    %1209 = vdwg.mxu0
    %v1210 = vadd.f32 %v275, %v1207
    %v1211 = vxor.u32 %v1210, 2147483648
    %v1212 = vmul.f32 %v1211, 1.442695
    %v1213 = vpow.pop %v1212
    %v1214 = vadd.f32 %v1213, 1.0
    %v1215 = vrcp.pop %v1214
    %v1216 = vmul.f32 1.0, %v1215
    %v1217 = vtanh.pop %v1210
    %v1219 = vrot.slane %v1020, 6
    %v1221 = vmul.f32 %v1216, %v1219
    %1223 = vrot.lane.b32.xlu0 %v1217, 64
    %v1224 = vpop.permute.xlu0 %1223
    %v1226 = vmul.f32 %v1216, %v1224
    %1228 = vrot.lane.b32.xlu0 %v1226, 32
    %v1229 = vpop.permute.xlu0 %1228
    %v1231 = vadd.f32 %v1221, %v1229
    %v1232 = vtanh.pop %v1231
    %1234 = vrot.lane.b32.xlu0 %v1232, 64
    %v1235 = vpop.permute.xlu0 %1234
    %v1237 = vmul.f32 %v1216, %v1235
    %1239 = vrot.lane.b32.xlu0 %v1237, 32
    %v1240 = vpop.permute.xlu0 %1239
    %1243 = vrot.lane.b32.xlu0 %v1134, 112
    %v1244 = vpop.permute.xlu0 %1243
    %v1246 = vsel %vm47, %v1240, %v1244
    %v1248 = vsel %vm398, %v1246, 0
    %1250 = vmatprep.subr.mxu0 0.0
    %1251 = vmatpush1.msra.mxu0 %v282
    %1252 = vmatprep.subr.mxu0 0.0
    %1253 = vmatpush1.msra.mxu0 %v283
    %1254 = vmatprep.subr.mxu0 0.0
    %1255 = vmatpush1.msra.mxu0 %v284
    %1256 = vmatprep.subr.mxu0 0.0
    %1257 = vmatpush1.msra.mxu0 %v285
    %1258 = vmatprep.subr.mxu0 0.0
    %1259 = vmatpush1.msra.mxu0 %v286
    %1260 = vmatprep.subr.mxu0 0.0
    %1261 = vmatpush1.msra.mxu0 %v287
    %1262 = vmatprep.subr.mxu0 0.0
    %1263 = vmatpush1.msra.mxu0 0.0
    %1264 = vmatprep.subr.mxu0 0.0
    %1265 = vmatpush1.msra.mxu0 0.0
    %1266 = vmatprep.subr.mxu0 0.0
    %1267 = vmatpush1.msra.mxu0 0.0
    %1268 = vmatprep.subr.mxu0 0.0
    %1269 = vmatpush1.msra.mxu0 0.0
    %1270 = vmatprep.subr.mxu0 0.0
    %1271 = vmatpush1.msra.mxu0 0.0
    %1272 = vmatprep.subr.mxu0 0.0
    %1273 = vmatpush1.msra.mxu0 0.0
    %1274 = vmatprep.subr.mxu0 0.0
    %1275 = vmatpush1.msra.mxu0 0.0
    %1276 = vmatprep.subr.mxu0 0.0
    %1277 = vmatpush1.msra.mxu0 0.0
    %1278 = vmatprep.subr.mxu0 0.0
    %1279 = vmatpush1.msra.mxu0 0.0
    %1280 = vmatprep.subr.mxu0 0.0
    %1281 = vmatpush1.msra.mxu0 0.0
    %1282 = vmatprep.subr.mxu0 0.0
    %1283 = vmatpush1.msra.mxu0 0.0
    %1284 = vmatprep.subr.mxu0 0.0
    %1285 = vmatpush1.msra.mxu0 0.0
    %1286 = vmatprep.subr.mxu0 0.0
    %1287 = vmatpush1.msra.mxu0 0.0
    %1288 = vmatprep.subr.mxu0 0.0
    %1289 = vmatpush1.msra.mxu0 0.0
    %1290 = vmatprep.subr.mxu0 0.0
    %1291 = vmatpush1.msra.mxu0 0.0
    %1292 = vmatprep.subr.mxu0 0.0
    %1293 = vmatpush1.msra.mxu0 0.0
    %1294 = vmatprep.subr.mxu0 0.0
    %1295 = vmatpush1.msra.mxu0 0.0
    %1296 = vmatprep.subr.mxu0 0.0
    %1297 = vmatpush1.msra.mxu0 0.0
    %1298 = vmatprep.subr.mxu0 0.0
    %1299 = vmatpush1.msra.mxu0 0.0
    %1300 = vmatprep.subr.mxu0 0.0
    %1301 = vmatpush1.msra.mxu0 0.0
    %1302 = vmatprep.subr.mxu0 0.0
    %1303 = vmatpush1.msra.mxu0 0.0
    %1304 = vmatprep.subr.mxu0 0.0
    %1305 = vmatpush1.msra.mxu0 0.0
    %1306 = vmatprep.subr.mxu0 0.0
    %1307 = vmatpush1.msra.mxu0 0.0
    %1308 = vmatprep.subr.mxu0 0.0
    %1309 = vmatpush1.msra.mxu0 0.0
    %1310 = vmatprep.subr.mxu0 0.0
    %1311 = vmatpush1.msra.mxu0 0.0
    %1312 = vmatprep.subr.mxu0 0.0
    %1313 = vmatpush1.msra.mxu0 0.0
    %1314 = vmatprep.mubr.f32.mxu0 0.0
    %1315 = vmatmul.mubr.f32.gmra.mrb[0].mxu0 %v1248
    %v1316 = vpop.f32.mrb[0].mxu0
    %v1317 = vadd.f32 %v396, %v1316
    %v1318 = vpop.f32.mrb[0].mxu0
    %1319 = vdwg.mxu0
    %v1320 = vxor.u32 %v1317, 2147483648
    %v1321 = vmul.f32 %v1320, 1.442695
    %v1322 = vpow.pop %v1321
    %v1323 = vadd.f32 %v1322, 1.0
    %v1324 = vrcp.pop %v1323
    %v1325 = vmul.f32 1.0, %v1324
    %v1326 = vtanh.pop %v1317
    %v1327 = vmul.f32 %v1325, %v1128
    %1329 = vrot.lane.b32.xlu0 %v1326, 96
    %v1330 = vpop.permute.xlu0 %1329
    %v1332 = vmul.f32 %v1325, %v1330
    %1334 = vrot.lane.b32.xlu0 %v1332, 16
    %v1335 = vpop.permute.xlu0 %1334
    %v1337 = vadd.f32 %v1327, %v1335
    %v1338 = vtanh.pop %v1337
    %1340 = vrot.lane.b32.xlu0 %v1338, 32
    %v1341 = vpop.permute.xlu0 %1340
    %v1343 = vmul.f32 %v1325, %v1341
    %v1344 = vsel %vm47, %v1240, 0
    %1346 = vmatprep.subr.mxu0 0.0
    %1347 = vmatpush1.msra.mxu0 %v278
    %1348 = vmatprep.subr.mxu0 0.0
    %1349 = vmatpush1.msra.mxu0 %v279
    %1350 = vmatprep.subr.mxu0 0.0
    %1351 = vmatpush1.msra.mxu0 %v280
    %1352 = vmatprep.subr.mxu0 0.0
    %1353 = vmatpush1.msra.mxu0 %v281
    %1354 = vmatprep.subr.mxu0 0.0
    %1355 = vmatpush1.msra.mxu0 0.0
    %1356 = vmatprep.subr.mxu0 0.0
    %1357 = vmatpush1.msra.mxu0 0.0
    %1358 = vmatprep.subr.mxu0 0.0
    %1359 = vmatpush1.msra.mxu0 0.0
    %1360 = vmatprep.subr.mxu0 0.0
    %1361 = vmatpush1.msra.mxu0 0.0
    %1362 = vmatprep.subr.mxu0 0.0
    %1363 = vmatpush1.msra.mxu0 0.0
    %1364 = vmatprep.subr.mxu0 0.0
    %1365 = vmatpush1.msra.mxu0 0.0
    %1366 = vmatprep.subr.mxu0 0.0
    %1367 = vmatpush1.msra.mxu0 0.0
    %1368 = vmatprep.subr.mxu0 0.0
    %1369 = vmatpush1.msra.mxu0 0.0
    %1370 = vmatprep.subr.mxu0 0.0
    %1371 = vmatpush1.msra.mxu0 0.0
    %1372 = vmatprep.subr.mxu0 0.0
    %1373 = vmatpush1.msra.mxu0 0.0
    %1374 = vmatprep.subr.mxu0 0.0
    %1375 = vmatpush1.msra.mxu0 0.0
    %1376 = vmatprep.subr.mxu0 0.0
    %1377 = vmatpush1.msra.mxu0 0.0
    %1378 = vmatprep.subr.mxu0 0.0
    %1379 = vmatpush1.msra.mxu0 0.0
    %1380 = vmatprep.subr.mxu0 0.0
    %1381 = vmatpush1.msra.mxu0 0.0
    %1382 = vmatprep.subr.mxu0 0.0
    %1383 = vmatpush1.msra.mxu0 0.0
    %1384 = vmatprep.subr.mxu0 0.0
    %1385 = vmatpush1.msra.mxu0 0.0
    %1386 = vmatprep.subr.mxu0 0.0
    %1387 = vmatpush1.msra.mxu0 0.0
    %1388 = vmatprep.subr.mxu0 0.0
    %1389 = vmatpush1.msra.mxu0 0.0
    %1390 = vmatprep.subr.mxu0 0.0
    %1391 = vmatpush1.msra.mxu0 0.0
    %1392 = vmatprep.subr.mxu0 0.0
    %1393 = vmatpush1.msra.mxu0 0.0
    %1394 = vmatprep.subr.mxu0 0.0
    %1395 = vmatpush1.msra.mxu0 0.0
    %1396 = vmatprep.subr.mxu0 0.0
    %1397 = vmatpush1.msra.mxu0 0.0
    %1398 = vmatprep.subr.mxu0 0.0
    %1399 = vmatpush1.msra.mxu0 0.0
    %1400 = vmatprep.subr.mxu0 0.0
    %1401 = vmatpush1.msra.mxu0 0.0
    %1402 = vmatprep.subr.mxu0 0.0
    %1403 = vmatpush1.msra.mxu0 0.0
    %1404 = vmatprep.subr.mxu0 0.0
    %1405 = vmatpush1.msra.mxu0 0.0
    %1406 = vmatprep.subr.mxu0 0.0
    %1407 = vmatpush1.msra.mxu0 0.0
    %1408 = vmatprep.subr.mxu0 0.0
    %1409 = vmatpush1.msra.mxu0 0.0
    %1410 = vmatprep.mubr.f32.mxu0 0.0
    %1411 = vmatmul.mubr.f32.gmra.mrb[0].mxu0 %v1344
    %v1412 = vpop.f32.mrb[0].mxu0
    %v1413 = vadd.f32 0.0, %v1412
    %v1414 = vpop.f32.mrb[0].mxu0
    %1415 = vdwg.mxu0
    %v1417 = vrot.slane %v1413, 6
    %v1419 = vadd.f32 %v275, %v1417
    %v1420 = vxor.u32 %v1419, 2147483648
    %v1421 = vmul.f32 %v1420, 1.442695
    %v1422 = vpow.pop %v1421
    %v1423 = vadd.f32 %v1422, 1.0
    %v1424 = vrcp.pop %v1423
    %v1425 = vmul.f32 1.0, %v1424
    %v1426 = vtanh.pop %v1419
    %v1428 = vrot.slane %v1231, 6
    %v1430 = vmul.f32 %v1425, %v1428
    %1432 = vrot.lane.b32.xlu0 %v1426, 64
    %v1433 = vpop.permute.xlu0 %1432
    %v1435 = vmul.f32 %v1425, %v1433
    %1437 = vrot.lane.b32.xlu0 %v1435, 32
    %v1438 = vpop.permute.xlu0 %1437
    %v1440 = vadd.f32 %v1430, %v1438
    %v1441 = vtanh.pop %v1440
    %1443 = vrot.lane.b32.xlu0 %v1441, 64
    %v1444 = vpop.permute.xlu0 %1443
    %v1446 = vmul.f32 %v1425, %v1444
    %1448 = vrot.lane.b32.xlu0 %v1446, 32
    %v1449 = vpop.permute.xlu0 %1448
    %v1452 = vrot.slane %v1343, 6
    %1453 = vrot.lane.b32.xlu0 %v1452, 112
    %v1454 = vpop.permute.xlu0 %1453
    %v1456 = vsel %vm47, %v1449, %v1454
    %v1458 = vrot.slane %v1456, 2
    %v1459 = vsel %vm398, %v1458, 0
    %1461 = vmatprep.subr.mxu0 0.0
    %1462 = vmatpush1.msra.mxu0 %v282
    %1463 = vmatprep.subr.mxu0 0.0
    %1464 = vmatpush1.msra.mxu0 %v283
    %1465 = vmatprep.subr.mxu0 0.0
    %1466 = vmatpush1.msra.mxu0 %v284
    %1467 = vmatprep.subr.mxu0 0.0
    %1468 = vmatpush1.msra.mxu0 %v285
    %1469 = vmatprep.subr.mxu0 0.0
    %1470 = vmatpush1.msra.mxu0 %v286
    %1471 = vmatprep.subr.mxu0 0.0
    %1472 = vmatpush1.msra.mxu0 %v287
    %1473 = vmatprep.subr.mxu0 0.0
    %1474 = vmatpush1.msra.mxu0 0.0
    %1475 = vmatprep.subr.mxu0 0.0
    %1476 = vmatpush1.msra.mxu0 0.0
    %1477 = vmatprep.subr.mxu0 0.0
    %1478 = vmatpush1.msra.mxu0 0.0
    %1479 = vmatprep.subr.mxu0 0.0
    %1480 = vmatpush1.msra.mxu0 0.0
    %1481 = vmatprep.subr.mxu0 0.0
    %1482 = vmatpush1.msra.mxu0 0.0
    %1483 = vmatprep.subr.mxu0 0.0
    %1484 = vmatpush1.msra.mxu0 0.0
    %1485 = vmatprep.subr.mxu0 0.0
    %1486 = vmatpush1.msra.mxu0 0.0
    %1487 = vmatprep.subr.mxu0 0.0
    %1488 = vmatpush1.msra.mxu0 0.0
    %1489 = vmatprep.subr.mxu0 0.0
    %1490 = vmatpush1.msra.mxu0 0.0
    %1491 = vmatprep.subr.mxu0 0.0
    %1492 = vmatpush1.msra.mxu0 0.0
    %1493 = vmatprep.subr.mxu0 0.0
    %1494 = vmatpush1.msra.mxu0 0.0
    %1495 = vmatprep.subr.mxu0 0.0
    %1496 = vmatpush1.msra.mxu0 0.0
    %1497 = vmatprep.subr.mxu0 0.0
    %1498 = vmatpush1.msra.mxu0 0.0
    %1499 = vmatprep.subr.mxu0 0.0
    %1500 = vmatpush1.msra.mxu0 0.0
    %1501 = vmatprep.subr.mxu0 0.0
    %1502 = vmatpush1.msra.mxu0 0.0
    %1503 = vmatprep.subr.mxu0 0.0
    %1504 = vmatpush1.msra.mxu0 0.0
    %1505 = vmatprep.subr.mxu0 0.0
    %1506 = vmatpush1.msra.mxu0 0.0
    %1507 = vmatprep.subr.mxu0 0.0
    %1508 = vmatpush1.msra.mxu0 0.0
    %1509 = vmatprep.subr.mxu0 0.0
    %1510 = vmatpush1.msra.mxu0 0.0
    %1511 = vmatprep.subr.mxu0 0.0
    %1512 = vmatpush1.msra.mxu0 0.0
    %1513 = vmatprep.subr.mxu0 0.0
    %1514 = vmatpush1.msra.mxu0 0.0
    %1515 = vmatprep.subr.mxu0 0.0
    %1516 = vmatpush1.msra.mxu0 0.0
    %1517 = vmatprep.subr.mxu0 0.0
    %1518 = vmatpush1.msra.mxu0 0.0
    %1519 = vmatprep.subr.mxu0 0.0
    %1520 = vmatpush1.msra.mxu0 0.0
    %1521 = vmatprep.subr.mxu0 0.0
    %1522 = vmatpush1.msra.mxu0 0.0
    %1523 = vmatprep.subr.mxu0 0.0
    %1524 = vmatpush1.msra.mxu0 0.0
    %1525 = vmatprep.mubr.f32.mxu0 0.0
    %1526 = vmatmul.mubr.f32.gmra.mrb[0].mxu0 %v1459
    %v1527 = vpop.f32.mrb[0].mxu0
    %v1528 = vadd.f32 %v396, %v1527
    %v1529 = vpop.f32.mrb[0].mxu0
    %1530 = vdwg.mxu0
    %v1531 = vxor.u32 %v1528, 2147483648
    %v1532 = vmul.f32 %v1531, 1.442695
    %v1533 = vpow.pop %v1532
    %v1534 = vadd.f32 %v1533, 1.0
    %v1535 = vrcp.pop %v1534
    %v1536 = vmul.f32 1.0, %v1535
    %v1537 = vtanh.pop %v1528
    %v1538 = vmul.f32 %v1536, %v1337
    %1540 = vrot.lane.b32.xlu0 %v1537, 96
    %v1541 = vpop.permute.xlu0 %1540
    %v1543 = vmul.f32 %v1536, %v1541
    %1545 = vrot.lane.b32.xlu0 %v1543, 16
    %v1546 = vpop.permute.xlu0 %1545
    %v1548 = vadd.f32 %v1538, %v1546
    %v1549 = vtanh.pop %v1548
    %1551 = vrot.lane.b32.xlu0 %v1549, 32
    %v1552 = vpop.permute.xlu0 %1551
    %v1554 = vmul.f32 %v1536, %v1552
    %v1555 = vrot.slane %v1446, 2
    %1556 = vrot.lane.b32.xlu0 %v1555, 32
    %v1557 = vpop.permute.xlu0 %1556
    %v1558 = vsel %vm47, %v1557, 0
    %1560 = vmatprep.subr.mxu0 0.0
    %1561 = vmatpush1.msra.mxu0 %v278
    %1562 = vmatprep.subr.mxu0 0.0
    %1563 = vmatpush1.msra.mxu0 %v279
    %1564 = vmatprep.subr.mxu0 0.0
    %1565 = vmatpush1.msra.mxu0 %v280
    %1566 = vmatprep.subr.mxu0 0.0
    %1567 = vmatpush1.msra.mxu0 %v281
    %1568 = vmatprep.subr.mxu0 0.0
    %1569 = vmatpush1.msra.mxu0 0.0
    %1570 = vmatprep.subr.mxu0 0.0
    %1571 = vmatpush1.msra.mxu0 0.0
    %1572 = vmatprep.subr.mxu0 0.0
    %1573 = vmatpush1.msra.mxu0 0.0
    %1574 = vmatprep.subr.mxu0 0.0
    %1575 = vmatpush1.msra.mxu0 0.0
    %1576 = vmatprep.subr.mxu0 0.0
    %1577 = vmatpush1.msra.mxu0 0.0
    %1578 = vmatprep.subr.mxu0 0.0
    %1579 = vmatpush1.msra.mxu0 0.0
    %1580 = vmatprep.subr.mxu0 0.0
    %1581 = vmatpush1.msra.mxu0 0.0
    %1582 = vmatprep.subr.mxu0 0.0
    %1583 = vmatpush1.msra.mxu0 0.0
    %1584 = vmatprep.subr.mxu0 0.0
    %1585 = vmatpush1.msra.mxu0 0.0
    %1586 = vmatprep.subr.mxu0 0.0
    %1587 = vmatpush1.msra.mxu0 0.0
    %1588 = vmatprep.subr.mxu0 0.0
    %1589 = vmatpush1.msra.mxu0 0.0
    %1590 = vmatprep.subr.mxu0 0.0
    %1591 = vmatpush1.msra.mxu0 0.0
    %1592 = vmatprep.subr.mxu0 0.0
    %1593 = vmatpush1.msra.mxu0 0.0
    %1594 = vmatprep.subr.mxu0 0.0
    %1595 = vmatpush1.msra.mxu0 0.0
    %1596 = vmatprep.subr.mxu0 0.0
    %1597 = vmatpush1.msra.mxu0 0.0
    %1598 = vmatprep.subr.mxu0 0.0
    %1599 = vmatpush1.msra.mxu0 0.0
    %1600 = vmatprep.subr.mxu0 0.0
    %1601 = vmatpush1.msra.mxu0 0.0
    %1602 = vmatprep.subr.mxu0 0.0
    %1603 = vmatpush1.msra.mxu0 0.0
    %1604 = vmatprep.subr.mxu0 0.0
    %1605 = vmatpush1.msra.mxu0 0.0
    %1606 = vmatprep.subr.mxu0 0.0
    %1607 = vmatpush1.msra.mxu0 0.0
    %1608 = vmatprep.subr.mxu0 0.0
    %1609 = vmatpush1.msra.mxu0 0.0
    %1610 = vmatprep.subr.mxu0 0.0
    %1611 = vmatpush1.msra.mxu0 0.0
    %1612 = vmatprep.subr.mxu0 0.0
    %1613 = vmatpush1.msra.mxu0 0.0
    %1614 = vmatprep.subr.mxu0 0.0
    %1615 = vmatpush1.msra.mxu0 0.0
    %1616 = vmatprep.subr.mxu0 0.0
    %1617 = vmatpush1.msra.mxu0 0.0
    %1618 = vmatprep.subr.mxu0 0.0
    %1619 = vmatpush1.msra.mxu0 0.0
    %1620 = vmatprep.subr.mxu0 0.0
    %1621 = vmatpush1.msra.mxu0 0.0
    %1622 = vmatprep.subr.mxu0 0.0
    %1623 = vmatpush1.msra.mxu0 0.0
    %1624 = vmatprep.mubr.f32.mxu0 0.0
    %1625 = vmatmul.mubr.f32.gmra.mrb[0].mxu0 %v1558
    %v1626 = vpop.f32.mrb[0].mxu0
    %v1627 = vadd.f32 0.0, %v1626
    %v1628 = vpop.f32.mrb[0].mxu0
    %1629 = vdwg.mxu0
    %v1631 = vrot.slane %v1627, 4
    %v1633 = vadd.f32 %v275, %v1631
    %v1634 = vxor.u32 %v1633, 2147483648
    %v1635 = vmul.f32 %v1634, 1.442695
    %v1636 = vpow.pop %v1635
    %v1637 = vadd.f32 %v1636, 1.0
    %v1638 = vrcp.pop %v1637
    %v1639 = vmul.f32 1.0, %v1638
    %v1640 = vtanh.pop %v1633
    %v1642 = vrot.slane %v1440, 6
    %v1644 = vmul.f32 %v1639, %v1642
    %1646 = vrot.lane.b32.xlu0 %v1640, 64
    %v1647 = vpop.permute.xlu0 %1646
    %v1649 = vmul.f32 %v1639, %v1647
    %1651 = vrot.lane.b32.xlu0 %v1649, 32
    %v1652 = vpop.permute.xlu0 %1651
    %v1654 = vadd.f32 %v1644, %v1652
    %v1655 = vtanh.pop %v1654
    %1657 = vrot.lane.b32.xlu0 %v1655, 64
    %v1658 = vpop.permute.xlu0 %1657
    %v1660 = vmul.f32 %v1639, %v1658
    %1662 = vrot.lane.b32.xlu0 %v1660, 32
    %v1663 = vpop.permute.xlu0 %1662
    %v1666 = vrot.slane %v1554, 4
    %1667 = vrot.lane.b32.xlu0 %v1666, 112
    %v1668 = vpop.permute.xlu0 %1667
    %v1670 = vsel %vm47, %v1663, %v1668
    %v1672 = vrot.slane %v1670, 4
    %v1673 = vsel %vm398, %v1672, 0
    %1675 = vmatprep.subr.mxu0 0.0
    %1676 = vmatpush1.msra.mxu0 %v282
    %1677 = vmatprep.subr.mxu0 0.0
    %1678 = vmatpush1.msra.mxu0 %v283
    %1679 = vmatprep.subr.mxu0 0.0
    %1680 = vmatpush1.msra.mxu0 %v284
    %1681 = vmatprep.subr.mxu0 0.0
    %1682 = vmatpush1.msra.mxu0 %v285
    %1683 = vmatprep.subr.mxu0 0.0
    %1684 = vmatpush1.msra.mxu0 %v286
    %1685 = vmatprep.subr.mxu0 0.0
    %1686 = vmatpush1.msra.mxu0 %v287
    %1687 = vmatprep.subr.mxu0 0.0
    %1688 = vmatpush1.msra.mxu0 0.0
    %1689 = vmatprep.subr.mxu0 0.0
    %1690 = vmatpush1.msra.mxu0 0.0
    %1691 = vmatprep.subr.mxu0 0.0
    %1692 = vmatpush1.msra.mxu0 0.0
    %1693 = vmatprep.subr.mxu0 0.0
    %1694 = vmatpush1.msra.mxu0 0.0
    %1695 = vmatprep.subr.mxu0 0.0
    %1696 = vmatpush1.msra.mxu0 0.0
    %1697 = vmatprep.subr.mxu0 0.0
    %1698 = vmatpush1.msra.mxu0 0.0
    %1699 = vmatprep.subr.mxu0 0.0
    %1700 = vmatpush1.msra.mxu0 0.0
    %1701 = vmatprep.subr.mxu0 0.0
    %1702 = vmatpush1.msra.mxu0 0.0
    %1703 = vmatprep.subr.mxu0 0.0
    %1704 = vmatpush1.msra.mxu0 0.0
    %1705 = vmatprep.subr.mxu0 0.0
    %1706 = vmatpush1.msra.mxu0 0.0
    %1707 = vmatprep.subr.mxu0 0.0
    %1708 = vmatpush1.msra.mxu0 0.0
    %1709 = vmatprep.subr.mxu0 0.0
    %1710 = vmatpush1.msra.mxu0 0.0
    %1711 = vmatprep.subr.mxu0 0.0
    %1712 = vmatpush1.msra.mxu0 0.0
    %1713 = vmatprep.subr.mxu0 0.0
    %1714 = vmatpush1.msra.mxu0 0.0
    %1715 = vmatprep.subr.mxu0 0.0
    %1716 = vmatpush1.msra.mxu0 0.0
    %1717 = vmatprep.subr.mxu0 0.0
    %1718 = vmatpush1.msra.mxu0 0.0
    %1719 = vmatprep.subr.mxu0 0.0
    %1720 = vmatpush1.msra.mxu0 0.0
    %1721 = vmatprep.subr.mxu0 0.0
    %1722 = vmatpush1.msra.mxu0 0.0
    %1723 = vmatprep.subr.mxu0 0.0
    %1724 = vmatpush1.msra.mxu0 0.0
    %1725 = vmatprep.subr.mxu0 0.0
    %1726 = vmatpush1.msra.mxu0 0.0
    %1727 = vmatprep.subr.mxu0 0.0
    %1728 = vmatpush1.msra.mxu0 0.0
    %1729 = vmatprep.subr.mxu0 0.0
    %1730 = vmatpush1.msra.mxu0 0.0
    %1731 = vmatprep.subr.mxu0 0.0
    %1732 = vmatpush1.msra.mxu0 0.0
    %1733 = vmatprep.subr.mxu0 0.0
    %1734 = vmatpush1.msra.mxu0 0.0
    %1735 = vmatprep.subr.mxu0 0.0
    %1736 = vmatpush1.msra.mxu0 0.0
    %1737 = vmatprep.subr.mxu0 0.0
    %1738 = vmatpush1.msra.mxu0 0.0
    %1739 = vmatprep.mubr.f32.mxu0 0.0
    %1740 = vmatmul.mubr.f32.gmra.mrb[0].mxu0 %v1673
    %v1741 = vpop.f32.mrb[0].mxu0
    %v1742 = vadd.f32 %v396, %v1741
    %v1743 = vpop.f32.mrb[0].mxu0
    %1744 = vdwg.mxu0
    %v1745 = vxor.u32 %v1742, 2147483648
    %v1746 = vmul.f32 %v1745, 1.442695
    %v1747 = vpow.pop %v1746
    %v1748 = vadd.f32 %v1747, 1.0
    %v1749 = vrcp.pop %v1748
    %v1750 = vmul.f32 1.0, %v1749
    %v1751 = vtanh.pop %v1742
    %v1752 = vmul.f32 %v1750, %v1548
    %1754 = vrot.lane.b32.xlu0 %v1751, 96
    %v1755 = vpop.permute.xlu0 %1754
    %v1757 = vmul.f32 %v1750, %v1755
    %1759 = vrot.lane.b32.xlu0 %v1757, 16
    %v1760 = vpop.permute.xlu0 %1759
    %v1762 = vadd.f32 %v1752, %v1760
    %v1763 = vtanh.pop %v1762
    %1765 = vrot.lane.b32.xlu0 %v1763, 32
    %v1766 = vpop.permute.xlu0 %1765
    %v1768 = vmul.f32 %v1750, %v1766
    %v1769 = vrot.slane %v1660, 4
    %1770 = vrot.lane.b32.xlu0 %v1769, 32
    %v1771 = vpop.permute.xlu0 %1770
    %v1772 = vsel %vm47, %v1771, 0
    %1774 = vmatprep.subr.mxu0 0.0
    %1775 = vmatpush1.msra.mxu0 %v278
    %1776 = vmatprep.subr.mxu0 0.0
    %1777 = vmatpush1.msra.mxu0 %v279
    %1778 = vmatprep.subr.mxu0 0.0
    %1779 = vmatpush1.msra.mxu0 %v280
    %1780 = vmatprep.subr.mxu0 0.0
    %1781 = vmatpush1.msra.mxu0 %v281
    %1782 = vmatprep.subr.mxu0 0.0
    %1783 = vmatpush1.msra.mxu0 0.0
    %1784 = vmatprep.subr.mxu0 0.0
    %1785 = vmatpush1.msra.mxu0 0.0
    %1786 = vmatprep.subr.mxu0 0.0
    %1787 = vmatpush1.msra.mxu0 0.0
    %1788 = vmatprep.subr.mxu0 0.0
    %1789 = vmatpush1.msra.mxu0 0.0
    %1790 = vmatprep.subr.mxu0 0.0
    %1791 = vmatpush1.msra.mxu0 0.0
    %1792 = vmatprep.subr.mxu0 0.0
    %1793 = vmatpush1.msra.mxu0 0.0
    %1794 = vmatprep.subr.mxu0 0.0
    %1795 = vmatpush1.msra.mxu0 0.0
    %1796 = vmatprep.subr.mxu0 0.0
    %1797 = vmatpush1.msra.mxu0 0.0
    %1798 = vmatprep.subr.mxu0 0.0
    %1799 = vmatpush1.msra.mxu0 0.0
    %1800 = vmatprep.subr.mxu0 0.0
    %1801 = vmatpush1.msra.mxu0 0.0
    %1802 = vmatprep.subr.mxu0 0.0
    %1803 = vmatpush1.msra.mxu0 0.0
    %1804 = vmatprep.subr.mxu0 0.0
    %1805 = vmatpush1.msra.mxu0 0.0
    %1806 = vmatprep.subr.mxu0 0.0
    %1807 = vmatpush1.msra.mxu0 0.0
    %1808 = vmatprep.subr.mxu0 0.0
    %1809 = vmatpush1.msra.mxu0 0.0
    %1810 = vmatprep.subr.mxu0 0.0
    %1811 = vmatpush1.msra.mxu0 0.0
    %1812 = vmatprep.subr.mxu0 0.0
    %1813 = vmatpush1.msra.mxu0 0.0
    %1814 = vmatprep.subr.mxu0 0.0
    %1815 = vmatpush1.msra.mxu0 0.0
    %1816 = vmatprep.subr.mxu0 0.0
    %1817 = vmatpush1.msra.mxu0 0.0
    %1818 = vmatprep.subr.mxu0 0.0
    %1819 = vmatpush1.msra.mxu0 0.0
    %1820 = vmatprep.subr.mxu0 0.0
    %1821 = vmatpush1.msra.mxu0 0.0
    %1822 = vmatprep.subr.mxu0 0.0
    %1823 = vmatpush1.msra.mxu0 0.0
    %1824 = vmatprep.subr.mxu0 0.0
    %1825 = vmatpush1.msra.mxu0 0.0
    %1826 = vmatprep.subr.mxu0 0.0
    %1827 = vmatpush1.msra.mxu0 0.0
    %1828 = vmatprep.subr.mxu0 0.0
    %1829 = vmatpush1.msra.mxu0 0.0
    %1830 = vmatprep.subr.mxu0 0.0
    %1831 = vmatpush1.msra.mxu0 0.0
    %1832 = vmatprep.subr.mxu0 0.0
    %1833 = vmatpush1.msra.mxu0 0.0
    %1834 = vmatprep.subr.mxu0 0.0
    %1835 = vmatpush1.msra.mxu0 0.0
    %1836 = vmatprep.subr.mxu0 0.0
    %1837 = vmatpush1.msra.mxu0 0.0
    %1838 = vmatprep.mubr.f32.mxu0 0.0
    %1839 = vmatmul.mubr.f32.gmra.mrb[0].mxu0 %v1772
    %v1840 = vpop.f32.mrb[0].mxu0
    %v1841 = vadd.f32 0.0, %v1840
    %v1842 = vpop.f32.mrb[0].mxu0
    %1843 = vdwg.mxu0
    %v1845 = vrot.slane %v1841, 2
    %v1847 = vadd.f32 %v275, %v1845
    %v1848 = vxor.u32 %v1847, 2147483648
    %v1849 = vmul.f32 %v1848, 1.442695
    %v1850 = vpow.pop %v1849
    %v1851 = vadd.f32 %v1850, 1.0
    %v1852 = vrcp.pop %v1851
    %v1853 = vmul.f32 1.0, %v1852
    %v1854 = vtanh.pop %v1847
    %v1856 = vrot.slane %v1654, 6
    %v1858 = vmul.f32 %v1853, %v1856
    %1860 = vrot.lane.b32.xlu0 %v1854, 64
    %v1861 = vpop.permute.xlu0 %1860
    %v1863 = vmul.f32 %v1853, %v1861
    %1865 = vrot.lane.b32.xlu0 %v1863, 32
    %v1866 = vpop.permute.xlu0 %1865
    %v1868 = vadd.f32 %v1858, %v1866
    %v1869 = vtanh.pop %v1868
    %1871 = vrot.lane.b32.xlu0 %v1869, 64
    %v1872 = vpop.permute.xlu0 %1871
    %v1874 = vmul.f32 %v1853, %v1872
    %1876 = vrot.lane.b32.xlu0 %v1874, 32
    %v1877 = vpop.permute.xlu0 %1876
    %v1880 = vrot.slane %v1768, 2
    %1881 = vrot.lane.b32.xlu0 %v1880, 112
    %v1882 = vpop.permute.xlu0 %1881
    %v1884 = vsel %vm47, %v1877, %v1882
    %v1886 = vrot.slane %v1884, 6
    %v1887 = vsel %vm398, %v1886, 0
    %1889 = vmatprep.subr.mxu0 0.0
    %1890 = vmatpush1.msra.mxu0 %v282
    %1891 = vmatprep.subr.mxu0 0.0
    %1892 = vmatpush1.msra.mxu0 %v283
    %1893 = vmatprep.subr.mxu0 0.0
    %1894 = vmatpush1.msra.mxu0 %v284
    %1895 = vmatprep.subr.mxu0 0.0
    %1896 = vmatpush1.msra.mxu0 %v285
    %1897 = vmatprep.subr.mxu0 0.0
    %1898 = vmatpush1.msra.mxu0 %v286
    %1899 = vmatprep.subr.mxu0 0.0
    %1900 = vmatpush1.msra.mxu0 %v287
    %1901 = vmatprep.subr.mxu0 0.0
    %1902 = vmatpush1.msra.mxu0 0.0
    %1903 = vmatprep.subr.mxu0 0.0
    %1904 = vmatpush1.msra.mxu0 0.0
    %1905 = vmatprep.subr.mxu0 0.0
    %1906 = vmatpush1.msra.mxu0 0.0
    %1907 = vmatprep.subr.mxu0 0.0
    %1908 = vmatpush1.msra.mxu0 0.0
    %1909 = vmatprep.subr.mxu0 0.0
    %1910 = vmatpush1.msra.mxu0 0.0
    %1911 = vmatprep.subr.mxu0 0.0
    %1912 = vmatpush1.msra.mxu0 0.0
    %1913 = vmatprep.subr.mxu0 0.0
    %1914 = vmatpush1.msra.mxu0 0.0
    %1915 = vmatprep.subr.mxu0 0.0
    %1916 = vmatpush1.msra.mxu0 0.0
    %1917 = vmatprep.subr.mxu0 0.0
    %1918 = vmatpush1.msra.mxu0 0.0
    %1919 = vmatprep.subr.mxu0 0.0
    %1920 = vmatpush1.msra.mxu0 0.0
    %1921 = vmatprep.subr.mxu0 0.0
    %1922 = vmatpush1.msra.mxu0 0.0
    %1923 = vmatprep.subr.mxu0 0.0
    %1924 = vmatpush1.msra.mxu0 0.0
    %1925 = vmatprep.subr.mxu0 0.0
    %1926 = vmatpush1.msra.mxu0 0.0
    %1927 = vmatprep.subr.mxu0 0.0
    %1928 = vmatpush1.msra.mxu0 0.0
    %1929 = vmatprep.subr.mxu0 0.0
    %1930 = vmatpush1.msra.mxu0 0.0
    %1931 = vmatprep.subr.mxu0 0.0
    %1932 = vmatpush1.msra.mxu0 0.0
    %1933 = vmatprep.subr.mxu0 0.0
    %1934 = vmatpush1.msra.mxu0 0.0
    %1935 = vmatprep.subr.mxu0 0.0
    %1936 = vmatpush1.msra.mxu0 0.0
    %1937 = vmatprep.subr.mxu0 0.0
    %1938 = vmatpush1.msra.mxu0 0.0
    %1939 = vmatprep.subr.mxu0 0.0
    %1940 = vmatpush1.msra.mxu0 0.0
    %1941 = vmatprep.subr.mxu0 0.0
    %1942 = vmatpush1.msra.mxu0 0.0
    %1943 = vmatprep.subr.mxu0 0.0
    %1944 = vmatpush1.msra.mxu0 0.0
    %1945 = vmatprep.subr.mxu0 0.0
    %1946 = vmatpush1.msra.mxu0 0.0
    %1947 = vmatprep.subr.mxu0 0.0
    %1948 = vmatpush1.msra.mxu0 0.0
    %1949 = vmatprep.subr.mxu0 0.0
    %1950 = vmatpush1.msra.mxu0 0.0
    %1951 = vmatprep.subr.mxu0 0.0
    %1952 = vmatpush1.msra.mxu0 0.0
    %1953 = vmatprep.mubr.f32.mxu0 0.0
    %1954 = vmatmul.mubr.f32.gmra.mrb[0].mxu0 %v1887
    %v1955 = vpop.f32.mrb[0].mxu0
    %v1956 = vadd.f32 %v396, %v1955
    %v1957 = vpop.f32.mrb[0].mxu0
    %1958 = vdwg.mxu0
    %v1959 = vxor.u32 %v1956, 2147483648
    %v1960 = vmul.f32 %v1959, 1.442695
    %v1961 = vpow.pop %v1960
    %v1962 = vadd.f32 %v1961, 1.0
    %v1963 = vrcp.pop %v1962
    %v1964 = vmul.f32 1.0, %v1963
    %v1965 = vtanh.pop %v1956
    %v1966 = vmul.f32 %v1964, %v1762
    %1968 = vrot.lane.b32.xlu0 %v1965, 96
    %v1969 = vpop.permute.xlu0 %1968
    %v1971 = vmul.f32 %v1964, %v1969
    %1973 = vrot.lane.b32.xlu0 %v1971, 16
    %v1974 = vpop.permute.xlu0 %1973
    %v1976 = vadd.f32 %v1966, %v1974
    %v1977 = vtanh.pop %v1976
    %1979 = vrot.lane.b32.xlu0 %v1977, 32
    %v1980 = vpop.permute.xlu0 %1979
    %v1982 = vmul.f32 %v1964, %v1980
    %v1983 = vld [vmem:[%s8] sm:$0xff]
    %v1984 = vld [vmem:[%s8 + $0x8] sm:$0xff]
    %v1985 = vld [vmem:[%s9] sm:$0x1]
    %v1987 = vlaneseq
    %v1988 = vshrl.u32 %v1987, 7
    %v1989 = vsub.s32 0, %v1988
    %v1990 = vrot.slane %v1985, %v1989
    %1993 = vrot.lane.b32.xlu0 %v1982, 80
    %v1994 = vpop.permute.xlu0 %1993
    %vm1995 = vcmask 130048
    %v1996 = vsel %vm1995, %v1994, 0
    %1998 = vmatprep.subr.mxu0 0.0
    %1999 = vmatpush1.msra.mxu0 %v1983
    %2000 = vmatprep.subr.mxu0 0.0
    %2001 = vmatpush1.msra.mxu0 %v1984
    %2002 = vmatprep.subr.mxu0 0.0
    %2003 = vmatpush1.msra.mxu0 0.0
    %2004 = vmatprep.subr.mxu0 0.0
    %2005 = vmatpush1.msra.mxu0 0.0
    %2006 = vmatprep.subr.mxu0 0.0
    %2007 = vmatpush1.msra.mxu0 0.0
    %2008 = vmatprep.subr.mxu0 0.0
    %2009 = vmatpush1.msra.mxu0 0.0
    %2010 = vmatprep.subr.mxu0 0.0
    %2011 = vmatpush1.msra.mxu0 0.0
    %2012 = vmatprep.subr.mxu0 0.0
    %2013 = vmatpush1.msra.mxu0 0.0
    %2014 = vmatprep.subr.mxu0 0.0
    %2015 = vmatpush1.msra.mxu0 0.0
    %2016 = vmatprep.subr.mxu0 0.0
    %2017 = vmatpush1.msra.mxu0 0.0
    %2018 = vmatprep.subr.mxu0 0.0
    %2019 = vmatpush1.msra.mxu0 0.0
    %2020 = vmatprep.subr.mxu0 0.0
    %2021 = vmatpush1.msra.mxu0 0.0
    %2022 = vmatprep.subr.mxu0 0.0
    %2023 = vmatpush1.msra.mxu0 0.0
    %2024 = vmatprep.subr.mxu0 0.0
    %2025 = vmatpush1.msra.mxu0 0.0
    %2026 = vmatprep.subr.mxu0 0.0
    %2027 = vmatpush1.msra.mxu0 0.0
    %2028 = vmatprep.subr.mxu0 0.0
    %2029 = vmatpush1.msra.mxu0 0.0
    %2030 = vmatprep.subr.mxu0 0.0
    %2031 = vmatpush1.msra.mxu0 0.0
    %2032 = vmatprep.subr.mxu0 0.0
    %2033 = vmatpush1.msra.mxu0 0.0
    %2034 = vmatprep.subr.mxu0 0.0
    %2035 = vmatpush1.msra.mxu0 0.0
    %2036 = vmatprep.subr.mxu0 0.0
    %2037 = vmatpush1.msra.mxu0 0.0
    %2038 = vmatprep.subr.mxu0 0.0
    %2039 = vmatpush1.msra.mxu0 0.0
    %2040 = vmatprep.subr.mxu0 0.0
    %2041 = vmatpush1.msra.mxu0 0.0
    %2042 = vmatprep.subr.mxu0 0.0
    %2043 = vmatpush1.msra.mxu0 0.0
    %2044 = vmatprep.subr.mxu0 0.0
    %2045 = vmatpush1.msra.mxu0 0.0
    %2046 = vmatprep.subr.mxu0 0.0
    %2047 = vmatpush1.msra.mxu0 0.0
    %2048 = vmatprep.subr.mxu0 0.0
    %2049 = vmatpush1.msra.mxu0 0.0
    %2050 = vmatprep.subr.mxu0 0.0
    %2051 = vmatpush1.msra.mxu0 0.0
    %2052 = vmatprep.subr.mxu0 0.0
    %2053 = vmatpush1.msra.mxu0 0.0
    %2054 = vmatprep.subr.mxu0 0.0
    %2055 = vmatpush1.msra.mxu0 0.0
    %2056 = vmatprep.subr.mxu0 0.0
    %2057 = vmatpush1.msra.mxu0 0.0
    %2058 = vmatprep.subr.mxu0 0.0
    %2059 = vmatpush1.msra.mxu0 0.0
    %2060 = vmatprep.subr.mxu0 0.0
    %2061 = vmatpush1.msra.mxu0 0.0
    %2062 = vmatprep.mubr.f32.mxu0 0.0
    %2063 = vmatmul.mubr.f32.gmra.mrb[0].mxu0 %v1996
    %v2064 = vpop.f32.mrb[0].mxu0
    %v2065 = vadd.f32 %v1990, %v2064
    %v2066 = vpop.f32.mrb[0].mxu0
    %2067 = vdwg.mxu0
    %vm2068 = vcmask 33792
    %2069 = vst.msk [vmem:[#allocation2] sm:$0x3] %vm2068, %v2065
    // Predicated region
    $region42: #{multi_class_forward.1} parent=1 // pred_check
      _
    $region43: #{multi_class_forward.1} parent=1 // pred_check_branch
      %2071 = sbr.rel (0) target = $region45
    $region44: #{multi_class_forward.1} parent=1 // pred_region
      %s2073 = ssub.s32 32, 32
      %2074 = vsyncadd [#allocation3], %s2073
      %s2076 = sshll.u32 [#allocation2], 4
      %s2077 = int_to_ptr.vmem [resolvable:$true] %s2076
      %2079 = dma.vmem_to_hbm [thread:$0]  %s2077, 32, %s10, [#allocation3]
    $region45: #{multi_class_forward.1} parent=1 // pred_fallthru
      _
    // Predicated region
    $region46: #{multi_class_forward.1} parent=1 // pred_check
      _
    $region47: #{multi_class_forward.1} parent=1 // pred_check_branch
      %2081 = sbr.rel (0) target = $region49
    $region48: #{multi_class_forward.1} parent=1 // pred_region
      %2082 = dma.done [#allocation3], 32
    $region49: #{multi_class_forward.1} parent=1 // pred_fallthru
      _
    %2083 = vsyncpa [#allocation3], 1

</llo_original>
